<compile_context>
chip_gen: v6e
topology: v6e:2x2x1
jax: 0.10.0
libtpu: 0.0.40
codegen_flags: <defaults>
</compile_context>

<pallas_src>
import jax
import jax.numpy as jnp
from jax.experimental import pallas as pl
from jax.experimental.pallas import tpu as pltpu

NUM_STATE = 22
PAD_STATE = 32           # fc1 input padded 22 -> 32 (full-dim last axis is legal)
H1, H2, H3 = 256, 512, 256
NUM_ACTIONS = 16
PAD_OUT = 128            # lane-dense f32 output slab; real q is [:, :NUM_ACTIONS]
LN_EPS = 1e-5


def _round_up(n, m):
    return ((n + m - 1) // m) * m


def _layernorm(h, gamma, beta):
    # Single-pass variance E[h^2] - mu^2, clamped at 0 (avoids rsqrt of a tiny
    # negative value when bf16-operand matmul outputs have |mu| ~ sigma).
    mu = jnp.mean(h, axis=-1, keepdims=True)
    ms = jnp.mean(h * h, axis=-1, keepdims=True)
    var = jnp.maximum(ms - mu * mu, 0.0)
    return (h - mu) * jax.lax.rsqrt(var + LN_EPS) * gamma + beta


def qnetwork_kernel(
    x_ref,
    w1_ref, b1_ref, g1_ref, be1_ref,
    w2_ref, b2_ref, g2_ref, be2_ref,
    w3_ref, b3_ref, g3_ref, be3_ref,
    wq_ref, bq_ref,
    q_ref,
):
    x = x_ref[...]                                             # (TILE_B, 32) bf16

    # fc1 -> ln1 -> (dropout: identity) -> relu   (bf16 MXU operands, f32 accum)
    h = jnp.dot(x, w1_ref[...], preferred_element_type=jnp.float32) + b1_ref[...]
    h = jnp.maximum(_layernorm(h, g1_ref[...], be1_ref[...]), 0.0)

    # fc2 -> ln2 -> (dropout: identity) -> relu
    h = jnp.dot(h.astype(jnp.bfloat16), w2_ref[...],
                preferred_element_type=jnp.float32) + b2_ref[...]
    h = jnp.maximum(_layernorm(h, g2_ref[...], be2_ref[...]), 0.0)

    # fc3 -> ln3 -> (dropout: identity) -> relu
    h = jnp.dot(h.astype(jnp.bfloat16), w3_ref[...],
                preferred_element_type=jnp.float32) + b3_ref[...]
    h = jnp.maximum(_layernorm(h, g3_ref[...], be3_ref[...]), 0.0)

    # Fused dueling head (value + advantage - mean(advantage)) in one lane-dense
    # bf16 matmul (MXU fast path); columns 16..127 are zero padding.
    q_ref[...] = (jnp.dot(h.astype(jnp.bfloat16), wq_ref[...],
                          preferred_element_type=jnp.float32) + bq_ref[...])
    # TODO(synk): optional `mask` argument (masked_fill) not wired in (mask=None path).
    # TODO(synk): training-mode dropout not implemented (inference identity).


def _choose_tile_b(batch, max_tile_b):
    # Aim for >= 2 grid steps whenever the batch allows so both v7x TensorCores
    # get work under dimension_semantics=("parallel",); keep tiles 16-row aligned
    # (bf16 sublane packing) and cap them to amortize per-step overhead.
    half = _round_up(pl.cdiv(batch, 2), 16)
    return max(16, min(max_tile_b, half))


def qnetwork_forward(x, prepared, *, max_tile_b=2048):
    B = x.shape[0]
    tile_b = _choose_tile_b(B, max_tile_b)
    grid = (pl.cdiv(B, tile_b),)

    # Cheap feature-only pad (22 -> 32) fused with the bf16 cast; no batch padding
    # (the ragged last block is safe: per-row math, OOB output rows are dropped).
    x_pad = jnp.pad(x.astype(jnp.bfloat16), ((0, 0), (0, PAD_STATE - NUM_STATE)))

    def _resident(shape):
        # Params stay VMEM-resident across every grid step (constant index_map).
        return pl.BlockSpec(shape, lambda i: (0, 0))

    in_specs = [pl.BlockSpec((tile_b, PAD_STATE), lambda i: (i, 0))]
    in_specs += [_resident(p.shape) for p in prepared]

    q_pad = pl.pallas_call(
        qnetwork_kernel,
        grid=grid,
        in_specs=in_specs,
        out_specs=pl.BlockSpec((tile_b, PAD_OUT), lambda i: (i, 0)),
        out_shape=jax.ShapeDtypeStruct((B, PAD_OUT), jnp.float32),
        compiler_params=pltpu.CompilerParams(
            dimension_semantics=("parallel",),      # megacore-shard batch axis
            vmem_limit_bytes=48 * 1024 * 1024,      # headroom for tile_b up to 2048
        ),
    )(x_pad, *prepared)
    return q_pad[:, :NUM_ACTIONS]


# ----------------------------- parameter handling -----------------------------

def _linear_init(key, fan_in, fan_out):
    # Mimic PyTorch nn.Linear default init: U(-1/sqrt(fan_in), 1/sqrt(fan_in)).
    kw, kb = jax.random.split(key)
    bound = 1.0 / jnp.sqrt(jnp.float32(fan_in))
    w = jax.random.uniform(kw, (fan_in, fan_out), jnp.float32, -bound, bound)
    b = jax.random.uniform(kb, (1, fan_out), jnp.float32, -bound, bound)
    return w, b


def make_params(key):
    keys = jax.random.split(key, 5)
    w1, b1 = _linear_init(keys[0], NUM_STATE, H1)
    w2, b2 = _linear_init(keys[1], H1, H2)
    w3, b3 = _linear_init(keys[2], H2, H3)
    wv, bv = _linear_init(keys[3], H3, 1)
    wa, ba = _linear_init(keys[4], H3, NUM_ACTIONS)
    g1, be1 = jnp.ones((1, H1), jnp.float32), jnp.zeros((1, H1), jnp.float32)
    g2, be2 = jnp.ones((1, H2), jnp.float32), jnp.zeros((1, H2), jnp.float32)
    g3, be3 = jnp.ones((1, H3), jnp.float32), jnp.zeros((1, H3), jnp.float32)
    return (w1, b1, g1, be1, w2, b2, g2, be2, w3, b3, g3, be3, wv, bv, wa, ba)


def prepare_params(params):
    """Host-side prep: pad fc1 to 32 inputs, bf16 matmul weights, fuse dueling head."""
    (w1, b1, g1, be1, w2, b2, g2, be2, w3, b3, g3, be3, wv, bv, wa, ba) = params
    w1_pad = jnp.zeros((PAD_STATE, H1), jnp.float32).at[:NUM_STATE, :].set(w1)
    # Fuse value head, advantage head and the advantage mean into one weight.
    # The mean uses only the 16 real action columns (computed before padding).
    wa_mean = jnp.mean(wa, axis=1, keepdims=True)          # (H3, 1)
    ba_mean = jnp.mean(ba, axis=1, keepdims=True)          # (1, 1)
    wq = wv + wa - wa_mean                                  # (H3, 16)
    bq = bv + ba - ba_mean                                  # (1, 16)
    wq_pad = jnp.zeros((H3, PAD_OUT), jnp.float32).at[:, :NUM_ACTIONS].set(wq)
    bq_pad = jnp.zeros((1, PAD_OUT), jnp.float32).at[:, :NUM_ACTIONS].set(bq)
    return (
        w1_pad.astype(jnp.bfloat16), b1, g1, be1,
        w2.astype(jnp.bfloat16), b2, g2, be2,
        w3.astype(jnp.bfloat16), b3, g3, be3,
        wq_pad.astype(jnp.bfloat16), bq_pad,
    )


# ------------------------------- references ----------------------------------

def reference_forward(x, params):
    """Pure-f32 reference matching the PyTorch module semantics (mask=None, eval)."""
    (w1, b1, g1, be1, w2, b2, g2, be2, w3, b3, g3, be3, wv, bv, wa, ba) = params

    def ln(h, g, be):
        mu = jnp.mean(h, axis=-1, keepdims=True)
        var = jnp.mean((h - mu) ** 2, axis=-1, keepdims=True)
        return (h - mu) * jax.lax.rsqrt(var + LN_EPS) * g + be

    h = jnp.maximum(ln(x @ w1 + b1, g1, be1), 0.0)
    h = jnp.maximum(ln(h @ w2 + b2, g2, be2), 0.0)
    h = jnp.maximum(ln(h @ w3 + b3, g3, be3), 0.0)
    value = h @ wv + bv
    adv = h @ wa + ba
    return value + adv - jnp.mean(adv, axis=-1, keepdims=True)


def kernel_equivalent(x, prepared):
    """Plain-JAX replica of the exact kernel math (bf16 operands, fused bf16 head)."""
    (w1, b1, g1, be1, w2, b2, g2, be2, w3, b3, g3, be3, wq, bq) = prepared
    xp = jnp.pad(x.astype(jnp.bfloat16), ((0, 0), (0, PAD_STATE - NUM_STATE)))
    h = jnp.dot(xp, w1, preferred_element_type=jnp.float32) + b1
    h = jnp.maximum(_layernorm(h, g1, be1), 0.0)
    h = jnp.dot(h.astype(jnp.bfloat16), w2, preferred_element_type=jnp.float32) + b2
    h = jnp.maximum(_layernorm(h, g2, be2), 0.0)
    h = jnp.dot(h.astype(jnp.bfloat16), w3, preferred_element_type=jnp.float32) + b3
    h = jnp.maximum(_layernorm(h, g3, be3), 0.0)
    q = jnp.dot(h.astype(jnp.bfloat16), wq, preferred_element_type=jnp.float32) + bq
    return q[:, :NUM_ACTIONS]


if __name__ == "__main__":
    key = jax.random.PRNGKey(0)
    k_x, k_p = jax.random.split(key)

    B = 2
    x = jax.random.normal(k_x, (B, NUM_STATE), jnp.float32)
    params = make_params(k_p)
    prepared = prepare_params(params)

    q = qnetwork_forward(x, prepared)
    q = jax.block_until_ready(q)

    assert q.shape == (B, NUM_ACTIONS)
    assert bool(jnp.all(jnp.isfinite(q)))

    # Exact-math check (same bf16 / fused-head computation, done in plain JAX).
    q_match = kernel_equivalent(x, prepared)
    assert jnp.allclose(q, q_match, atol=2e-3, rtol=2e-3), \
        float(jnp.max(jnp.abs(q - q_match)))

    # Semantic check against the full-f32 PyTorch-equivalent forward
    # (loose tolerance: matmuls use bf16 operands).
    q_f32 = reference_forward(x, params)
    assert jnp.allclose(q, q_f32, atol=5e-2, rtol=5e-2), \
        float(jnp.max(jnp.abs(q - q_f32)))

    print("KERNEL_OK")
</pallas_src>

<mosaic_0001>
module attributes {stable_mosaic.version = 11 : i64} {
  func.func @qnetwork_kernel(%arg0: i32, %arg1: memref<16x32xbf16, #tpu.memory_space<vmem>>, %arg2: memref<32x256xbf16, #tpu.memory_space<vmem>>, %arg3: memref<1x256xf32, #tpu.memory_space<vmem>>, %arg4: memref<1x256xf32, #tpu.memory_space<vmem>>, %arg5: memref<1x256xf32, #tpu.memory_space<vmem>>, %arg6: memref<256x512xbf16, #tpu.memory_space<vmem>>, %arg7: memref<1x512xf32, #tpu.memory_space<vmem>>, %arg8: memref<1x512xf32, #tpu.memory_space<vmem>>, %arg9: memref<1x512xf32, #tpu.memory_space<vmem>>, %arg10: memref<512x256xbf16, #tpu.memory_space<vmem>>, %arg11: memref<1x256xf32, #tpu.memory_space<vmem>>, %arg12: memref<1x256xf32, #tpu.memory_space<vmem>>, %arg13: memref<1x256xf32, #tpu.memory_space<vmem>>, %arg14: memref<256x128xbf16, #tpu.memory_space<vmem>>, %arg15: memref<1x128xf32, #tpu.memory_space<vmem>>, %arg16: memref<16x128xf32, #tpu.memory_space<vmem>>) attributes {dimension_semantics = [#tpu.dimension_semantics<parallel>], iteration_bounds = array<i64: 1>, scalar_prefetch = 0 : i64, scratch_operands = 0 : i64, tpu.core_type = #tpu.core_type<tc>, window_params = [{transform_indices = @transform_0, window_bounds = array<i64: 16, 32>}, {pipeline_mode = #tpu.pipeline_mode<synchronous>, transform_indices = @transform_1, window_bounds = array<i64: 32, 256>}, {pipeline_mode = #tpu.pipeline_mode<synchronous>, transform_indices = @transform_2, window_bounds = array<i64: 1, 256>}, {pipeline_mode = #tpu.pipeline_mode<synchronous>, transform_indices = @transform_3, window_bounds = array<i64: 1, 256>}, {pipeline_mode = #tpu.pipeline_mode<synchronous>, transform_indices = @transform_4, window_bounds = array<i64: 1, 256>}, {pipeline_mode = #tpu.pipeline_mode<synchronous>, transform_indices = @transform_5, window_bounds = array<i64: 256, 512>}, {pipeline_mode = #tpu.pipeline_mode<synchronous>, transform_indices = @transform_6, window_bounds = array<i64: 1, 512>}, {pipeline_mode = #tpu.pipeline_mode<synchronous>, transform_indices = @transform_7, window_bounds = array<i64: 1, 512>}, {pipeline_mode = #tpu.pipeline_mode<synchronous>, transform_indices = @transform_8, window_bounds = array<i64: 1, 512>}, {pipeline_mode = #tpu.pipeline_mode<synchronous>, transform_indices = @transform_9, window_bounds = array<i64: 512, 256>}, {pipeline_mode = #tpu.pipeline_mode<synchronous>, transform_indices = @transform_10, window_bounds = array<i64: 1, 256>}, {pipeline_mode = #tpu.pipeline_mode<synchronous>, transform_indices = @transform_11, window_bounds = array<i64: 1, 256>}, {pipeline_mode = #tpu.pipeline_mode<synchronous>, transform_indices = @transform_12, window_bounds = array<i64: 1, 256>}, {pipeline_mode = #tpu.pipeline_mode<synchronous>, transform_indices = @transform_13, window_bounds = array<i64: 256, 128>}, {pipeline_mode = #tpu.pipeline_mode<synchronous>, transform_indices = @transform_14, window_bounds = array<i64: 1, 128>}, {transform_indices = @transform_15, window_bounds = array<i64: 16, 128>}]} {
    %c0 = arith.constant 0 : index
    %c0_0 = arith.constant 0 : index
    %0 = vector.load %arg1[%c0, %c0_0] : memref<16x32xbf16, #tpu.memory_space<vmem>>, vector<16x32xbf16>
    %c0_1 = arith.constant 0 : index
    %c0_2 = arith.constant 0 : index
    %1 = vector.load %arg2[%c0_1, %c0_2] : memref<32x256xbf16, #tpu.memory_space<vmem>>, vector<32x256xbf16>
    %cst = arith.constant dense<0.000000e+00> : vector<16x256xf32>
    %2 = tpu.matmul %0, %1, %cst {dimension_numbers = #tpu.dot_dimension_numbers<[1], [0], [0], [1], [0, 0, 1, 1], [], []>} : vector<16x32xbf16>, vector<32x256xbf16>, vector<16x256xf32> -> vector<16x256xf32>
    %c0_3 = arith.constant 0 : index
    %c0_4 = arith.constant 0 : index
    %3 = vector.load %arg3[%c0_3, %c0_4] : memref<1x256xf32, #tpu.memory_space<vmem>>, vector<1x256xf32>
    %4 = vector.broadcast %3 : vector<1x256xf32> to vector<16x256xf32>
    %5 = arith.addf %2, %4 : vector<16x256xf32>
    %c0_5 = arith.constant 0 : index
    %c0_6 = arith.constant 0 : index
    %6 = vector.load %arg4[%c0_5, %c0_6] : memref<1x256xf32, #tpu.memory_space<vmem>>, vector<1x256xf32>
    %c0_7 = arith.constant 0 : index
    %c0_8 = arith.constant 0 : index
    %7 = vector.load %arg5[%c0_7, %c0_8] : memref<1x256xf32, #tpu.memory_space<vmem>>, vector<1x256xf32>
    %cst_9 = arith.constant dense<0.000000e+00> : vector<16xf32>
    %8 = vector.multi_reduction <add>, %5, %cst_9 [1] : vector<16x256xf32> to vector<16xf32>
    %9 = vector.shape_cast %8 : vector<16xf32> to vector<16x1xf32>
    %cst_10 = arith.constant 2.560000e+02 : f32
    %10 = vector.broadcast %cst_10 : f32 to vector<16x1xf32>
    %11 = arith.divf %9, %10 : vector<16x1xf32>
    %12 = arith.mulf %5, %5 : vector<16x256xf32>
    %cst_11 = arith.constant dense<0.000000e+00> : vector<16xf32>
    %13 = vector.multi_reduction <add>, %12, %cst_11 [1] : vector<16x256xf32> to vector<16xf32>
    %14 = vector.shape_cast %13 : vector<16xf32> to vector<16x1xf32>
    %cst_12 = arith.constant 2.560000e+02 : f32
    %15 = vector.broadcast %cst_12 : f32 to vector<16x1xf32>
    %16 = arith.divf %14, %15 : vector<16x1xf32>
    %17 = arith.mulf %11, %11 : vector<16x1xf32>
    %18 = arith.subf %16, %17 : vector<16x1xf32>
    %cst_13 = arith.constant 0.000000e+00 : f32
    %19 = vector.broadcast %cst_13 : f32 to vector<16x1xf32>
    %20 = arith.maximumf %18, %19 : vector<16x1xf32>
    %21 = vector.broadcast %11 : vector<16x1xf32> to vector<16x256xf32>
    %22 = arith.subf %5, %21 : vector<16x256xf32>
    %cst_14 = arith.constant 9.99999974E-6 : f32
    %23 = vector.broadcast %cst_14 : f32 to vector<16x1xf32>
    %24 = arith.addf %20, %23 : vector<16x1xf32>
    %25 = math.rsqrt %24 : vector<16x1xf32>
    %26 = vector.broadcast %25 : vector<16x1xf32> to vector<16x256xf32>
    %27 = arith.mulf %22, %26 : vector<16x256xf32>
    %28 = vector.broadcast %6 : vector<1x256xf32> to vector<16x256xf32>
    %29 = arith.mulf %27, %28 : vector<16x256xf32>
    %30 = vector.broadcast %7 : vector<1x256xf32> to vector<16x256xf32>
    %31 = arith.addf %29, %30 : vector<16x256xf32>
    %cst_15 = arith.constant 0.000000e+00 : f32
    %32 = vector.broadcast %cst_15 : f32 to vector<16x256xf32>
    %33 = arith.maximumf %31, %32 : vector<16x256xf32>
    %34 = arith.truncf %33 : vector<16x256xf32> to vector<16x256xbf16>
    %c0_16 = arith.constant 0 : index
    %c0_17 = arith.constant 0 : index
    %35 = vector.load %arg6[%c0_16, %c0_17] : memref<256x512xbf16, #tpu.memory_space<vmem>>, vector<256x512xbf16>
    %cst_18 = arith.constant dense<0.000000e+00> : vector<16x512xf32>
    %36 = tpu.matmul %34, %35, %cst_18 {dimension_numbers = #tpu.dot_dimension_numbers<[1], [0], [0], [1], [0, 0, 1, 1], [], []>} : vector<16x256xbf16>, vector<256x512xbf16>, vector<16x512xf32> -> vector<16x512xf32>
    %c0_19 = arith.constant 0 : index
    %c0_20 = arith.constant 0 : index
    %37 = vector.load %arg7[%c0_19, %c0_20] : memref<1x512xf32, #tpu.memory_space<vmem>>, vector<1x512xf32>
    %38 = vector.broadcast %37 : vector<1x512xf32> to vector<16x512xf32>
    %39 = arith.addf %36, %38 : vector<16x512xf32>
    %c0_21 = arith.constant 0 : index
    %c0_22 = arith.constant 0 : index
    %40 = vector.load %arg8[%c0_21, %c0_22] : memref<1x512xf32, #tpu.memory_space<vmem>>, vector<1x512xf32>
    %c0_23 = arith.constant 0 : index
    %c0_24 = arith.constant 0 : index
    %41 = vector.load %arg9[%c0_23, %c0_24] : memref<1x512xf32, #tpu.memory_space<vmem>>, vector<1x512xf32>
    %cst_25 = arith.constant dense<0.000000e+00> : vector<16xf32>
    %42 = vector.multi_reduction <add>, %39, %cst_25 [1] : vector<16x512xf32> to vector<16xf32>
    %43 = vector.shape_cast %42 : vector<16xf32> to vector<16x1xf32>
    %cst_26 = arith.constant 5.120000e+02 : f32
    %44 = vector.broadcast %cst_26 : f32 to vector<16x1xf32>
    %45 = arith.divf %43, %44 : vector<16x1xf32>
    %46 = arith.mulf %39, %39 : vector<16x512xf32>
    %cst_27 = arith.constant dense<0.000000e+00> : vector<16xf32>
    %47 = vector.multi_reduction <add>, %46, %cst_27 [1] : vector<16x512xf32> to vector<16xf32>
    %48 = vector.shape_cast %47 : vector<16xf32> to vector<16x1xf32>
    %cst_28 = arith.constant 5.120000e+02 : f32
    %49 = vector.broadcast %cst_28 : f32 to vector<16x1xf32>
    %50 = arith.divf %48, %49 : vector<16x1xf32>
    %51 = arith.mulf %45, %45 : vector<16x1xf32>
    %52 = arith.subf %50, %51 : vector<16x1xf32>
    %cst_29 = arith.constant 0.000000e+00 : f32
    %53 = vector.broadcast %cst_29 : f32 to vector<16x1xf32>
    %54 = arith.maximumf %52, %53 : vector<16x1xf32>
    %55 = vector.broadcast %45 : vector<16x1xf32> to vector<16x512xf32>
    %56 = arith.subf %39, %55 : vector<16x512xf32>
    %cst_30 = arith.constant 9.99999974E-6 : f32
    %57 = vector.broadcast %cst_30 : f32 to vector<16x1xf32>
    %58 = arith.addf %54, %57 : vector<16x1xf32>
    %59 = math.rsqrt %58 : vector<16x1xf32>
    %60 = vector.broadcast %59 : vector<16x1xf32> to vector<16x512xf32>
    %61 = arith.mulf %56, %60 : vector<16x512xf32>
    %62 = vector.broadcast %40 : vector<1x512xf32> to vector<16x512xf32>
    %63 = arith.mulf %61, %62 : vector<16x512xf32>
    %64 = vector.broadcast %41 : vector<1x512xf32> to vector<16x512xf32>
    %65 = arith.addf %63, %64 : vector<16x512xf32>
    %cst_31 = arith.constant 0.000000e+00 : f32
    %66 = vector.broadcast %cst_31 : f32 to vector<16x512xf32>
    %67 = arith.maximumf %65, %66 : vector<16x512xf32>
    %68 = arith.truncf %67 : vector<16x512xf32> to vector<16x512xbf16>
    %c0_32 = arith.constant 0 : index
    %c0_33 = arith.constant 0 : index
    %69 = vector.load %arg10[%c0_32, %c0_33] : memref<512x256xbf16, #tpu.memory_space<vmem>>, vector<512x256xbf16>
    %cst_34 = arith.constant dense<0.000000e+00> : vector<16x256xf32>
    %70 = tpu.matmul %68, %69, %cst_34 {dimension_numbers = #tpu.dot_dimension_numbers<[1], [0], [0], [1], [0, 0, 1, 1], [], []>} : vector<16x512xbf16>, vector<512x256xbf16>, vector<16x256xf32> -> vector<16x256xf32>
    %c0_35 = arith.constant 0 : index
    %c0_36 = arith.constant 0 : index
    %71 = vector.load %arg11[%c0_35, %c0_36] : memref<1x256xf32, #tpu.memory_space<vmem>>, vector<1x256xf32>
    %72 = vector.broadcast %71 : vector<1x256xf32> to vector<16x256xf32>
    %73 = arith.addf %70, %72 : vector<16x256xf32>
    %c0_37 = arith.constant 0 : index
    %c0_38 = arith.constant 0 : index
    %74 = vector.load %arg12[%c0_37, %c0_38] : memref<1x256xf32, #tpu.memory_space<vmem>>, vector<1x256xf32>
    %c0_39 = arith.constant 0 : index
    %c0_40 = arith.constant 0 : index
    %75 = vector.load %arg13[%c0_39, %c0_40] : memref<1x256xf32, #tpu.memory_space<vmem>>, vector<1x256xf32>
    %cst_41 = arith.constant dense<0.000000e+00> : vector<16xf32>
    %76 = vector.multi_reduction <add>, %73, %cst_41 [1] : vector<16x256xf32> to vector<16xf32>
    %77 = vector.shape_cast %76 : vector<16xf32> to vector<16x1xf32>
    %cst_42 = arith.constant 2.560000e+02 : f32
    %78 = vector.broadcast %cst_42 : f32 to vector<16x1xf32>
    %79 = arith.divf %77, %78 : vector<16x1xf32>
    %80 = arith.mulf %73, %73 : vector<16x256xf32>
    %cst_43 = arith.constant dense<0.000000e+00> : vector<16xf32>
    %81 = vector.multi_reduction <add>, %80, %cst_43 [1] : vector<16x256xf32> to vector<16xf32>
    %82 = vector.shape_cast %81 : vector<16xf32> to vector<16x1xf32>
    %cst_44 = arith.constant 2.560000e+02 : f32
    %83 = vector.broadcast %cst_44 : f32 to vector<16x1xf32>
    %84 = arith.divf %82, %83 : vector<16x1xf32>
    %85 = arith.mulf %79, %79 : vector<16x1xf32>
    %86 = arith.subf %84, %85 : vector<16x1xf32>
    %cst_45 = arith.constant 0.000000e+00 : f32
    %87 = vector.broadcast %cst_45 : f32 to vector<16x1xf32>
    %88 = arith.maximumf %86, %87 : vector<16x1xf32>
    %89 = vector.broadcast %79 : vector<16x1xf32> to vector<16x256xf32>
    %90 = arith.subf %73, %89 : vector<16x256xf32>
    %cst_46 = arith.constant 9.99999974E-6 : f32
    %91 = vector.broadcast %cst_46 : f32 to vector<16x1xf32>
    %92 = arith.addf %88, %91 : vector<16x1xf32>
    %93 = math.rsqrt %92 : vector<16x1xf32>
    %94 = vector.broadcast %93 : vector<16x1xf32> to vector<16x256xf32>
    %95 = arith.mulf %90, %94 : vector<16x256xf32>
    %96 = vector.broadcast %74 : vector<1x256xf32> to vector<16x256xf32>
    %97 = arith.mulf %95, %96 : vector<16x256xf32>
    %98 = vector.broadcast %75 : vector<1x256xf32> to vector<16x256xf32>
    %99 = arith.addf %97, %98 : vector<16x256xf32>
    %cst_47 = arith.constant 0.000000e+00 : f32
    %100 = vector.broadcast %cst_47 : f32 to vector<16x256xf32>
    %101 = arith.maximumf %99, %100 : vector<16x256xf32>
    %102 = arith.truncf %101 : vector<16x256xf32> to vector<16x256xbf16>
    %c0_48 = arith.constant 0 : index
    %c0_49 = arith.constant 0 : index
    %103 = vector.load %arg14[%c0_48, %c0_49] : memref<256x128xbf16, #tpu.memory_space<vmem>>, vector<256x128xbf16>
    %cst_50 = arith.constant dense<0.000000e+00> : vector<16x128xf32>
    %104 = tpu.matmul %102, %103, %cst_50 {dimension_numbers = #tpu.dot_dimension_numbers<[1], [0], [0], [1], [0, 0, 1, 1], [], []>} : vector<16x256xbf16>, vector<256x128xbf16>, vector<16x128xf32> -> vector<16x128xf32>
    %c0_51 = arith.constant 0 : index
    %c0_52 = arith.constant 0 : index
    %105 = vector.load %arg15[%c0_51, %c0_52] : memref<1x128xf32, #tpu.memory_space<vmem>>, vector<1x128xf32>
    %106 = vector.broadcast %105 : vector<1x128xf32> to vector<16x128xf32>
    %107 = arith.addf %104, %106 : vector<16x128xf32>
    %c0_53 = arith.constant 0 : index
    %c0_54 = arith.constant 0 : index
    %108 = vector.load %arg16[%c0_53, %c0_54] : memref<16x128xf32, #tpu.memory_space<vmem>>, vector<16x128xf32>
    tpu.vector_store %arg16[%c0_53, %c0_54], %107 {strides = array<i32>} : memref<16x128xf32, #tpu.memory_space<vmem>>, vector<16x128xf32>,
    return
  }
  func.func @transform_0(%arg0: i32) -> (i32, i32) {
    %c0_i32 = arith.constant 0 : i32
    %c0_i32_0 = arith.constant 0 : i32
    return %arg0, %c0_i32 : i32, i32
  }
  func.func @transform_1(%arg0: i32) -> (i32, i32) {
    %c0_i32 = arith.constant 0 : i32
    %c0_i32_0 = arith.constant 0 : i32
    %c0_i32_1 = arith.constant 0 : i32
    return %c0_i32, %c0_i32_0 : i32, i32
  }
  func.func @transform_2(%arg0: i32) -> (i32, i32) {
    %c0_i32 = arith.constant 0 : i32
    %c0_i32_0 = arith.constant 0 : i32
    %c0_i32_1 = arith.constant 0 : i32
    return %c0_i32, %c0_i32_0 : i32, i32
  }
  func.func @transform_3(%arg0: i32) -> (i32, i32) {
    %c0_i32 = arith.constant 0 : i32
    %c0_i32_0 = arith.constant 0 : i32
    %c0_i32_1 = arith.constant 0 : i32
    return %c0_i32, %c0_i32_0 : i32, i32
  }
  func.func @transform_4(%arg0: i32) -> (i32, i32) {
    %c0_i32 = arith.constant 0 : i32
    %c0_i32_0 = arith.constant 0 : i32
    %c0_i32_1 = arith.constant 0 : i32
    return %c0_i32, %c0_i32_0 : i32, i32
  }
  func.func @transform_5(%arg0: i32) -> (i32, i32) {
    %c0_i32 = arith.constant 0 : i32
    %c0_i32_0 = arith.constant 0 : i32
    %c0_i32_1 = arith.constant 0 : i32
    return %c0_i32, %c0_i32_0 : i32, i32
  }
  func.func @transform_6(%arg0: i32) -> (i32, i32) {
    %c0_i32 = arith.constant 0 : i32
    %c0_i32_0 = arith.constant 0 : i32
    %c0_i32_1 = arith.constant 0 : i32
    return %c0_i32, %c0_i32_0 : i32, i32
  }
  func.func @transform_7(%arg0: i32) -> (i32, i32) {
    %c0_i32 = arith.constant 0 : i32
    %c0_i32_0 = arith.constant 0 : i32
    %c0_i32_1 = arith.constant 0 : i32
    return %c0_i32, %c0_i32_0 : i32, i32
  }
  func.func @transform_8(%arg0: i32) -> (i32, i32) {
    %c0_i32 = arith.constant 0 : i32
    %c0_i32_0 = arith.constant 0 : i32
    %c0_i32_1 = arith.constant 0 : i32
    return %c0_i32, %c0_i32_0 : i32, i32
  }
  func.func @transform_9(%arg0: i32) -> (i32, i32) {
    %c0_i32 = arith.constant 0 : i32
    %c0_i32_0 = arith.constant 0 : i32
    %c0_i32_1 = arith.constant 0 : i32
    return %c0_i32, %c0_i32_0 : i32, i32
  }
  func.func @transform_10(%arg0: i32) -> (i32, i32) {
    %c0_i32 = arith.constant 0 : i32
    %c0_i32_0 = arith.constant 0 : i32
    %c0_i32_1 = arith.constant 0 : i32
    return %c0_i32, %c0_i32_0 : i32, i32
  }
  func.func @transform_11(%arg0: i32) -> (i32, i32) {
    %c0_i32 = arith.constant 0 : i32
    %c0_i32_0 = arith.constant 0 : i32
    %c0_i32_1 = arith.constant 0 : i32
    return %c0_i32, %c0_i32_0 : i32, i32
  }
  func.func @transform_12(%arg0: i32) -> (i32, i32) {
    %c0_i32 = arith.constant 0 : i32
    %c0_i32_0 = arith.constant 0 : i32
    %c0_i32_1 = arith.constant 0 : i32
    return %c0_i32, %c0_i32_0 : i32, i32
  }
  func.func @transform_13(%arg0: i32) -> (i32, i32) {
    %c0_i32 = arith.constant 0 : i32
    %c0_i32_0 = arith.constant 0 : i32
    %c0_i32_1 = arith.constant 0 : i32
    return %c0_i32, %c0_i32_0 : i32, i32
  }
  func.func @transform_14(%arg0: i32) -> (i32, i32) {
    %c0_i32 = arith.constant 0 : i32
    %c0_i32_0 = arith.constant 0 : i32
    %c0_i32_1 = arith.constant 0 : i32
    return %c0_i32, %c0_i32_0 : i32, i32
  }
  func.func @transform_15(%arg0: i32) -> (i32, i32) {
    %c0_i32 = arith.constant 0 : i32
    %c0_i32_0 = arith.constant 0 : i32
    return %arg0, %c0_i32 : i32, i32
  }
}

</mosaic_0001>

<llo_original>
// kernel: tpu_custom_call.1
$region0: #{tpu_custom_call.1}
  #allocation0 [shape = 'u32[]', space=smem, size = 0x4, offset = 0x4, fixed_abs, tag = 'smem constant byte address 0x4 - core index']
  #allocation1 [shape = 'u32[144,128]{1,0:T(1,128)}', space=vmem, size = 0x12000, scoped, tag = 'internal scratch']
  %s0 = inlined_call_operand.hbm [shape: bf16[2,32], index: 0, kind: input, shape index: {}]
  %s1 = inlined_call_operand.hbm [shape: bf16[32,256], index: 1, kind: input, shape index: {}]
  %s2 = inlined_call_operand.hbm [shape: f32[1,256], index: 2, kind: input, shape index: {}]
  %s3 = inlined_call_operand.hbm [shape: f32[1,256], index: 3, kind: input, shape index: {}]
  %s4 = inlined_call_operand.hbm [shape: f32[1,256], index: 4, kind: input, shape index: {}]
  %s5 = inlined_call_operand.hbm [shape: bf16[256,512], index: 5, kind: input, shape index: {}]
  %s6 = inlined_call_operand.vmem [shape: f32[1,512], index: 6, kind: input, shape index: {}]
  %s7 = inlined_call_operand.vmem [shape: f32[1,512], index: 7, kind: input, shape index: {}]
  %s8 = inlined_call_operand.vmem [shape: f32[1,512], index: 8, kind: input, shape index: {}]
  %s9 = inlined_call_operand.hbm [shape: bf16[512,256], index: 9, kind: input, shape index: {}]
  %s10 = inlined_call_operand.vmem [shape: f32[1,256], index: 10, kind: input, shape index: {}]
  %s11 = inlined_call_operand.vmem [shape: f32[1,256], index: 11, kind: input, shape index: {}]
  %s12 = inlined_call_operand.vmem [shape: f32[1,256], index: 12, kind: input, shape index: {}]
  %s13 = inlined_call_operand.hbm [shape: bf16[256,128], index: 13, kind: input, shape index: {}]
  %s14 = inlined_call_operand.vmem [shape: f32[1,128], index: 14, kind: input, shape index: {}]
  %s15 = inlined_call_operand.hbm [shape: f32[2,128], index: 15, kind: output, shape index: {}]
  %s16 = sld [smem:[#allocation0]]
  $region102: #{tpu_custom_call.1} parent=0
    _
  %s18 = ssub.s32 1, %s16
  %s19 = scalar_select 0, %s18, %s16
  $region1: #{tpu_custom_call.1} parent=0
    #allocation2 [shape = 'u8[4096]{0}', space=vmem, size = 0x1000, scoped, tag = 'input window, operand 0, single buffered']
    #allocation3 [shape = 's32[1]{0}', space=sflag, size = 0x4, scoped, tag = 'scoped memory for tpu_custom_call.1']
    #allocation4 [shape = 's32[1]{0}', space=sflag, size = 0x4, scoped, tag = 'scoped memory for tpu_custom_call.1']
    #allocation5 [shape = 'u8[16384]{0}', space=vmem, size = 0x4000, scoped, tag = 'input window, operand 1, single buffered']
    #allocation6 [shape = 's32[1]{0}', space=sflag, size = 0x4, scoped, tag = 'scoped memory for tpu_custom_call.1']
    #allocation7 [shape = 'u8[1024]{0}', space=vmem, size = 0x400, scoped, tag = 'input window, operand 2, single buffered']
    #allocation8 [shape = 'u8[1024]{0}', space=vmem, size = 0x400, scoped, tag = 'input window, operand 3, single buffered']
    #allocation9 [shape = 's32[1]{0}', space=sflag, size = 0x4, scoped, tag = 'scoped memory for tpu_custom_call.1']
    #allocation10 [shape = 'u8[1024]{0}', space=vmem, size = 0x400, scoped, tag = 'input window, operand 4, single buffered']
    #allocation11 [shape = 'u8[262144]{0}', space=vmem, size = 0x40000, scoped, tag = 'input window, operand 5, single buffered']
    #allocation12 [shape = 's32[1]{0}', space=sflag, size = 0x4, scoped, tag = 'scoped memory for tpu_custom_call.1']
    #allocation13 [shape = 'u8[262144]{0}', space=vmem, size = 0x40000, scoped, tag = 'input window, operand 9, single buffered']
    #allocation14 [shape = 'u8[65536]{0}', space=vmem, size = 0x10000, scoped, tag = 'input window, operand 13, single buffered']
    #allocation15 [shape = 's32[1]{0}', space=sflag, size = 0x4, scoped, tag = 'scoped memory for tpu_custom_call.1']
    #allocation16 [shape = 'u8[8192]{0}', space=vmem, size = 0x2000, scoped, tag = 'output window, operand 0, single buffered']
    %20 = vsyncpa [#allocation3], 0
    %21 = vsyncpa [#allocation6], 0
    %22 = vsyncpa [#allocation9], 0
    %23 = vsyncpa [#allocation12], 0
    %24 = vsyncpa [#allocation15], 0
    %25 = vsyncpa [#allocation4], 0
    // Predicated region
    $region2: #{tpu_custom_call.1} parent=1 // pred_check
      _
    $region3: #{tpu_custom_call.1} parent=1 // pred_check_branch
      %27 = sbr.rel (0) target = $region5
    $region4: #{tpu_custom_call.1} parent=1 // pred_region
      %s29 = ssub.s32 128, 16
      %30 = vsyncadd [#allocation3], %s29
      %s31 = sshll.u32 [#allocation2], 4
      %s32 = int_to_ptr.vmem [resolvable:$true] %s31
      %37 = dma.hbm_to_vmem [thread:$0]  %s0, 16, %s32, [#allocation3], 16, 16, 1
    $region5: #{tpu_custom_call.1} parent=1 // pred_fallthru
      _
    // Predicated region
    $region6: #{tpu_custom_call.1} parent=1 // pred_check
      _
    $region7: #{tpu_custom_call.1} parent=1 // pred_check_branch
      %39 = sbr.rel (0) target = $region9
    $region8: #{tpu_custom_call.1} parent=1 // pred_region
      %s41 = ssub.s32 512, 512
      %42 = vsyncadd [#allocation6], %s41
      %s43 = sshll.u32 [#allocation5], 4
      %s44 = int_to_ptr.vmem [resolvable:$true] %s43
      %49 = dma.hbm_to_vmem [thread:$0]  %s1, 512, %s44, [#allocation6], 128, 128, 8
    $region9: #{tpu_custom_call.1} parent=1 // pred_fallthru
      _
    // Predicated region
    $region10: #{tpu_custom_call.1} parent=1 // pred_check
      _
    $region11: #{tpu_custom_call.1} parent=1 // pred_check_branch
      %51 = sbr.rel (0) target = $region13
    $region12: #{tpu_custom_call.1} parent=1 // pred_region
      %s53 = ssub.s32 32, 32
      %54 = vsyncadd [#allocation6], %s53
      %s56 = sshll.u32 [#allocation7], 4
      %s57 = int_to_ptr.vmem [resolvable:$true] %s56
      %59 = dma.hbm_to_vmem [thread:$0]  %s2, 32, %s57, [#allocation6]
    $region13: #{tpu_custom_call.1} parent=1 // pred_fallthru
      _
    // Predicated region
    $region14: #{tpu_custom_call.1} parent=1 // pred_check
      _
    $region15: #{tpu_custom_call.1} parent=1 // pred_check_branch
      %61 = sbr.rel (0) target = $region17
    $region16: #{tpu_custom_call.1} parent=1 // pred_region
      %s63 = ssub.s32 32, 32
      %64 = vsyncadd [#allocation9], %s63
      %s66 = sshll.u32 [#allocation8], 4
      %s67 = int_to_ptr.vmem [resolvable:$true] %s66
      %69 = dma.hbm_to_vmem [thread:$0]  %s3, 32, %s67, [#allocation9]
    $region17: #{tpu_custom_call.1} parent=1 // pred_fallthru
      _
    // Predicated region
    $region18: #{tpu_custom_call.1} parent=1 // pred_check
      _
    $region19: #{tpu_custom_call.1} parent=1 // pred_check_branch
      %71 = sbr.rel (0) target = $region21
    $region20: #{tpu_custom_call.1} parent=1 // pred_region
      %s73 = ssub.s32 32, 32
      %74 = vsyncadd [#allocation9], %s73
      %s76 = sshll.u32 [#allocation10], 4
      %s77 = int_to_ptr.vmem [resolvable:$true] %s76
      %79 = dma.hbm_to_vmem [thread:$0]  %s4, 32, %s77, [#allocation9]
    $region21: #{tpu_custom_call.1} parent=1 // pred_fallthru
      _
    // Predicated region
    $region22: #{tpu_custom_call.1} parent=1 // pred_check
      _
    $region23: #{tpu_custom_call.1} parent=1 // pred_check_branch
      %81 = sbr.rel (0) target = $region25
    $region24: #{tpu_custom_call.1} parent=1 // pred_region
      %s83 = ssub.s32 8192, 8192
      %84 = vsyncadd [#allocation12], %s83
      %s85 = sshll.u32 [#allocation11], 4
      %s86 = int_to_ptr.vmem [resolvable:$true] %s85
      %91 = dma.hbm_to_vmem [thread:$0]  %s5, 8192, %s86, [#allocation12], 256, 256, 16
    $region25: #{tpu_custom_call.1} parent=1 // pred_fallthru
      _
    // Predicated region
    $region26: #{tpu_custom_call.1} parent=1 // pred_check
      _
    $region27: #{tpu_custom_call.1} parent=1 // pred_check_branch
      %93 = sbr.rel (0) target = $region29
    $region28: #{tpu_custom_call.1} parent=1 // pred_region
      _
    $region29: #{tpu_custom_call.1} parent=1 // pred_fallthru
      _
    // Predicated region
    $region30: #{tpu_custom_call.1} parent=1 // pred_check
      _
    $region31: #{tpu_custom_call.1} parent=1 // pred_check_branch
      %95 = sbr.rel (0) target = $region33
    $region32: #{tpu_custom_call.1} parent=1 // pred_region
      _
    $region33: #{tpu_custom_call.1} parent=1 // pred_fallthru
      _
    // Predicated region
    $region34: #{tpu_custom_call.1} parent=1 // pred_check
      _
    $region35: #{tpu_custom_call.1} parent=1 // pred_check_branch
      %97 = sbr.rel (0) target = $region37
    $region36: #{tpu_custom_call.1} parent=1 // pred_region
      _
    $region37: #{tpu_custom_call.1} parent=1 // pred_fallthru
      _
    // Predicated region
    $region38: #{tpu_custom_call.1} parent=1 // pred_check
      _
    $region39: #{tpu_custom_call.1} parent=1 // pred_check_branch
      %99 = sbr.rel (0) target = $region41
    $region40: #{tpu_custom_call.1} parent=1 // pred_region
      %s101 = ssub.s32 8192, 8192
      %102 = vsyncadd [#allocation12], %s101
      %s103 = sshll.u32 [#allocation13], 4
      %s104 = int_to_ptr.vmem [resolvable:$true] %s103
      %109 = dma.hbm_to_vmem [thread:$0]  %s9, 8192, %s104, [#allocation12], 128, 128, 8
    $region41: #{tpu_custom_call.1} parent=1 // pred_fallthru
      _
    // Predicated region
    $region42: #{tpu_custom_call.1} parent=1 // pred_check
      _
    $region43: #{tpu_custom_call.1} parent=1 // pred_check_branch
      %111 = sbr.rel (0) target = $region45
    $region44: #{tpu_custom_call.1} parent=1 // pred_region
      _
    $region45: #{tpu_custom_call.1} parent=1 // pred_fallthru
      _
    // Predicated region
    $region46: #{tpu_custom_call.1} parent=1 // pred_check
      _
    $region47: #{tpu_custom_call.1} parent=1 // pred_check_branch
      %113 = sbr.rel (0) target = $region49
    $region48: #{tpu_custom_call.1} parent=1 // pred_region
      _
    $region49: #{tpu_custom_call.1} parent=1 // pred_fallthru
      _
    // Predicated region
    $region50: #{tpu_custom_call.1} parent=1 // pred_check
      _
    $region51: #{tpu_custom_call.1} parent=1 // pred_check_branch
      %115 = sbr.rel (0) target = $region53
    $region52: #{tpu_custom_call.1} parent=1 // pred_region
      _
    $region53: #{tpu_custom_call.1} parent=1 // pred_fallthru
      _
    // Predicated region
    $region54: #{tpu_custom_call.1} parent=1 // pred_check
      _
    $region55: #{tpu_custom_call.1} parent=1 // pred_check_branch
      %117 = sbr.rel (0) target = $region57
    $region56: #{tpu_custom_call.1} parent=1 // pred_region
      %s119 = ssub.s32 2048, 2048
      %120 = vsyncadd [#allocation15], %s119
      %s121 = sshll.u32 [#allocation14], 4
      %s122 = int_to_ptr.vmem [resolvable:$true] %s121
      %127 = dma.hbm_to_vmem [thread:$0]  %s13, 2048, %s122, [#allocation15], 64, 64, 4
    $region57: #{tpu_custom_call.1} parent=1 // pred_fallthru
      _
    // Predicated region
    $region58: #{tpu_custom_call.1} parent=1 // pred_check
      _
    $region59: #{tpu_custom_call.1} parent=1 // pred_check_branch
      %129 = sbr.rel (0) target = $region61
    $region60: #{tpu_custom_call.1} parent=1 // pred_region
      _
    $region61: #{tpu_custom_call.1} parent=1 // pred_fallthru
      _
    // Predicated region
    $region62: #{tpu_custom_call.1} parent=1 // pred_check
      _
    $region63: #{tpu_custom_call.1} parent=1 // pred_check_branch
      %131 = sbr.rel (0) target = $region65
    $region64: #{tpu_custom_call.1} parent=1 // pred_region
      %132 = dma.done [#allocation3], 128
    $region65: #{tpu_custom_call.1} parent=1 // pred_fallthru
      _
    // Predicated region
    $region66: #{tpu_custom_call.1} parent=1 // pred_check
      _
    $region67: #{tpu_custom_call.1} parent=1 // pred_check_branch
      %134 = sbr.rel (0) target = $region69
    $region68: #{tpu_custom_call.1} parent=1 // pred_region
      %135 = dma.done [#allocation6], 512
    $region69: #{tpu_custom_call.1} parent=1 // pred_fallthru
      _
    // Predicated region
    $region70: #{tpu_custom_call.1} parent=1 // pred_check
      _
    $region71: #{tpu_custom_call.1} parent=1 // pred_check_branch
      %137 = sbr.rel (0) target = $region73
    $region72: #{tpu_custom_call.1} parent=1 // pred_region
      %138 = dma.done [#allocation6], 32
    $region73: #{tpu_custom_call.1} parent=1 // pred_fallthru
      _
    // Predicated region
    $region74: #{tpu_custom_call.1} parent=1 // pred_check
      _
    $region75: #{tpu_custom_call.1} parent=1 // pred_check_branch
      %140 = sbr.rel (0) target = $region77
    $region76: #{tpu_custom_call.1} parent=1 // pred_region
      %141 = dma.done [#allocation9], 32
    $region77: #{tpu_custom_call.1} parent=1 // pred_fallthru
      _
    // Predicated region
    $region78: #{tpu_custom_call.1} parent=1 // pred_check
      _
    $region79: #{tpu_custom_call.1} parent=1 // pred_check_branch
      %143 = sbr.rel (0) target = $region81
    $region80: #{tpu_custom_call.1} parent=1 // pred_region
      %144 = dma.done [#allocation9], 32
    $region81: #{tpu_custom_call.1} parent=1 // pred_fallthru
      _
    // Predicated region
    $region82: #{tpu_custom_call.1} parent=1 // pred_check
      _
    $region83: #{tpu_custom_call.1} parent=1 // pred_check_branch
      %146 = sbr.rel (0) target = $region85
    $region84: #{tpu_custom_call.1} parent=1 // pred_region
      %147 = dma.done [#allocation12], 8192
    $region85: #{tpu_custom_call.1} parent=1 // pred_fallthru
      _
    // Predicated region
    $region86: #{tpu_custom_call.1} parent=1 // pred_check
      _
    $region87: #{tpu_custom_call.1} parent=1 // pred_check_branch
      %149 = sbr.rel (0) target = $region89
    $region88: #{tpu_custom_call.1} parent=1 // pred_region
      %150 = dma.done [#allocation12], 8192
    $region89: #{tpu_custom_call.1} parent=1 // pred_fallthru
      _
    // Predicated region
    $region90: #{tpu_custom_call.1} parent=1 // pred_check
      _
    $region91: #{tpu_custom_call.1} parent=1 // pred_check_branch
      %152 = sbr.rel (0) target = $region93
    $region92: #{tpu_custom_call.1} parent=1 // pred_region
      %153 = dma.done [#allocation15], 2048
    $region93: #{tpu_custom_call.1} parent=1 // pred_fallthru
      _
    %v155 = vld [vmem:[#allocation2] sm:$0x1]
    %v156 = vld [vmem:[#allocation2 + $0x1] sm:$0x1]
    %v157 = vld [vmem:[#allocation2 + $0x2] sm:$0x1]
    %v158 = vld [vmem:[#allocation2 + $0x3] sm:$0x1]
    %v159 = vld [vmem:[#allocation2 + $0x4] sm:$0x1]
    %v160 = vld [vmem:[#allocation2 + $0x5] sm:$0x1]
    %v161 = vld [vmem:[#allocation2 + $0x6] sm:$0x1]
    %v162 = vld [vmem:[#allocation2 + $0x7] sm:$0x1]
    %v163 = vld [vmem:[#allocation5] sm:$0xff]
    %v164 = vld [vmem:[#allocation5 + $0x8] sm:$0xff]
    %v165 = vld [vmem:[#allocation5 + $0x10] sm:$0xff]
    %v166 = vld [vmem:[#allocation5 + $0x18] sm:$0xff]
    %v167 = vld [vmem:[#allocation7] sm:$0x3]
    %v169 = vlaneseq
    %v170 = vshrl.u32 %v169, 7
    %v171 = vsub.s32 0, %v170
    %v172 = vrot.slane %v167, %v171
    %v173 = vlaneseq
    %v174 = vshrl.u32 %v173, 7
    %v175 = vsub.s32 1, %v174
    %v176 = vrot.slane %v167, %v175
    %v187 = vcombine.low %v155, %v156
    %v188 = vcombine.low %v157, %v158
    %v189 = vcombine.low %v159, %v160
    %v190 = vcombine.low %v161, %v162
    %v192 = vunpack.c.l.s4 1966171168
    %v193 = vunpack.c.0.s8 %v192
    %v194 = vlaneseq
    %v195 = vshrl.u32 %v194, 7
    %v196 = vsub.s32 %v193, %v195
    %v197 = vrot.slane %v187, %v196
    %v199 = vunpack.c.l.s4 1966171168
    %v200 = vunpack.c.0.s8 %v199
    %v201 = vlaneseq
    %v202 = vshrl.u32 %v201, 7
    %v203 = vsub.s32 %v200, %v202
    %v204 = vrot.slane %v188, %v203
    %v206 = vunpack.c.l.s4 1966171168
    %v207 = vunpack.c.0.s8 %v206
    %v208 = vlaneseq
    %v209 = vshrl.u32 %v208, 7
    %v210 = vsub.s32 %v207, %v209
    %v211 = vrot.slane %v189, %v210
    %v213 = vunpack.c.l.s4 1966171168
    %v214 = vunpack.c.0.s8 %v213
    %v215 = vlaneseq
    %v216 = vshrl.u32 %v215, 7
    %v217 = vsub.s32 %v214, %v216
    %v218 = vrot.slane %v190, %v217
    %v219 = vcombine.low %v197, %v204
    %v220 = vcombine.low %v211, %v218
    %v222 = vunpack.c.l.s4 1966171168
    %v223 = vunpack.c.0.s8 %v222
    %v224 = vlaneseq
    %v225 = vshrl.u32 %v224, 7
    %v226 = vsub.s32 %v223, %v225
    %v227 = vrot.slane %v219, %v226
    %v229 = vunpack.c.l.s4 1966171168
    %v230 = vunpack.c.0.s8 %v229
    %v231 = vlaneseq
    %v232 = vshrl.u32 %v231, 7
    %v233 = vsub.s32 %v230, %v232
    %v234 = vrot.slane %v220, %v233
    %v235 = vcombine.low %v227, %v234
    %v240 = vunpack.c.l.b16 %v163
    %v241 = vunpack.c.h.b16 %v163
    %v242 = vunpack.c.l.b16 %v164
    %v243 = vunpack.c.h.b16 %v164
    %v244 = vunpack.c.l.b16 %v165
    %v245 = vunpack.c.h.b16 %v165
    %v246 = vunpack.c.l.b16 %v166
    %v247 = vunpack.c.h.b16 %v166
    %v248 = vpack.c.b16 %v242, %v240
    %v249 = vpack.c.b16 %v243, %v241
    %v250 = vpack.c.b16 %v246, %v244
    %v251 = vpack.c.b16 %v247, %v245
    %vm256 = vcmask 261120
    %v258 = vsel %vm256, %v235, 0
    %260 = vmatprep.subr.bf16.mxu0 0
    %261 = vmatpush1.bf16.msra.mxu0 0
    %262 = vmatprep.subr.bf16.mxu0 0
    %263 = vmatpush1.bf16.msra.mxu0 0
    %264 = vmatprep.subr.bf16.mxu0 0
    %265 = vmatpush1.bf16.msra.mxu0 0
    %266 = vmatprep.subr.bf16.mxu0 0
    %267 = vmatpush1.bf16.msra.mxu0 0
    %268 = vmatprep.subr.bf16.mxu0 0
    %269 = vmatpush1.bf16.msra.mxu0 0
    %270 = vmatprep.subr.bf16.mxu0 0
    %271 = vmatpush1.bf16.msra.mxu0 0
    %272 = vmatprep.subr.bf16.mxu0 %v251
    %273 = vmatpush1.bf16.msra.mxu0 %v250
    %274 = vmatprep.subr.bf16.mxu0 %v249
    %275 = vmatpush1.bf16.msra.mxu0 %v248
    %276 = vmatprep.subr.bf16.mxu0 0
    %277 = vmatpush2.bf16.msra.mxu0 0
    %278 = vmatprep.subr.bf16.mxu0 0
    %279 = vmatpush2.bf16.msra.mxu0 0
    %280 = vmatprep.subr.bf16.mxu0 0
    %281 = vmatpush2.bf16.msra.mxu0 0
    %282 = vmatprep.subr.bf16.mxu0 0
    %283 = vmatpush2.bf16.msra.mxu0 0
    %284 = vmatprep.subr.bf16.mxu0 0
    %285 = vmatpush2.bf16.msra.mxu0 0
    %286 = vmatprep.subr.bf16.mxu0 0
    %287 = vmatpush2.bf16.msra.mxu0 0
    %288 = vmatprep.subr.bf16.mxu0 0
    %289 = vmatpush2.bf16.msra.mxu0 0
    %290 = vmatprep.subr.bf16.mxu0 0
    %291 = vmatpush2.bf16.msra.mxu0 0
    %292 = vmatprep.mubr.bf16.mxu0 0
    %293 = vmatmul.mubr.bf16.gmra.mxu0 %v258
    %v294 = vpop.f32.mrf.mxu0
    %v295 = vadd.f32 %v172, %v294
    %v296 = vpop.f32.mrf.mxu0
    %v297 = vadd.f32 %v176, %v296
    %v298 = vpop.f32.mrf.mxu0
    %v299 = vadd.f32 %v172, %v298
    %v300 = vpop.f32.mrf.mxu0
    %v301 = vadd.f32 %v176, %v300
    %302 = vdwg.mxu0
    %v303 = vld [vmem:[#allocation8] sm:$0x3]
    %v304 = vld [vmem:[#allocation10] sm:$0x3]
    %v305 = vadd.f32 %v295, %v297
    %306 = vadd.xlane.f32.xlu0 %v305
    %v307 = vpop.xlane.xlu0 %306
    %v308 = vadd.f32 %v299, %v301
    %309 = vadd.xlane.f32.xlu0 %v308
    %v310 = vpop.xlane.xlu0 %309
    %v311 = vrcp.pop 256.0
    %v312 = vmul.f32 %v307, %v311
    %v313 = vmul.f32 %v310, %v311
    %v314 = vmul.f32 %v295, %v295
    %v315 = vmul.f32 %v297, %v297
    %v316 = vmul.f32 %v299, %v299
    %v317 = vmul.f32 %v301, %v301
    %v318 = vadd.f32 %v314, %v315
    %319 = vadd.xlane.f32.xlu0 %v318
    %v320 = vpop.xlane.xlu0 %319
    %v321 = vadd.f32 %v316, %v317
    %322 = vadd.xlane.f32.xlu0 %v321
    %v323 = vpop.xlane.xlu0 %322
    %v324 = vmul.f32 %v320, %v311
    %v325 = vmul.f32 %v323, %v311
    %v326 = vmul.f32 %v312, %v312
    %v327 = vmul.f32 %v313, %v313
    %v328 = vsub.f32 %v324, %v326
    %v329 = vsub.f32 %v325, %v327
    %v330 = vmax.f32 %v328, 0.0
    %v331 = vmax.f32 %v329, 0.0
    %v332 = vsub.f32 %v295, %v312
    %v333 = vsub.f32 %v297, %v312
    %v334 = vsub.f32 %v299, %v313
    %v335 = vsub.f32 %v301, %v313
    %v336 = vadd.f32 %v330, 1e-05
    %v337 = vadd.f32 %v331, 1e-05
    %v338 = vrsqrt.pop %v336
    %v339 = vrsqrt.pop %v337
    %v340 = vmul.f32 %v332, %v338
    %v341 = vmul.f32 %v333, %v338
    %v342 = vmul.f32 %v334, %v339
    %v343 = vmul.f32 %v335, %v339
    %v345 = vlaneseq
    %v346 = vshrl.u32 %v345, 7
    %v347 = vsub.s32 0, %v346
    %v348 = vrot.slane %v303, %v347
    %v349 = vlaneseq
    %v350 = vshrl.u32 %v349, 7
    %v351 = vsub.s32 1, %v350
    %v352 = vrot.slane %v303, %v351
    %v355 = vmul.f32 %v340, %v348
    %v356 = vmul.f32 %v341, %v352
    %v357 = vmul.f32 %v342, %v348
    %v358 = vmul.f32 %v343, %v352
    %v360 = vlaneseq
    %v361 = vshrl.u32 %v360, 7
    %v362 = vsub.s32 0, %v361
    %v363 = vrot.slane %v304, %v362
    %v364 = vlaneseq
    %v365 = vshrl.u32 %v364, 7
    %v366 = vsub.s32 1, %v365
    %v367 = vrot.slane %v304, %v366
    %v370 = vadd.f32 %v355, %v363
    %v371 = vadd.f32 %v356, %v367
    %v372 = vadd.f32 %v357, %v363
    %v373 = vadd.f32 %v358, %v367
    %v374 = vmax.f32 %v370, 0.0
    %v375 = vmax.f32 %v371, 0.0
    %v376 = vmax.f32 %v372, 0.0
    %v377 = vmax.f32 %v373, 0.0
    %v378 = vpack.c.bf16 %v376, %v374
    %v379 = vpack.c.bf16 %v377, %v375
    %v380 = vld [vmem:[#allocation11] sm:$0xff]
    %v381 = vld [vmem:[#allocation11 + $0x8] sm:$0xff]
    %v382 = vld [vmem:[#allocation11 + $0x10] sm:$0xff]
    %v383 = vld [vmem:[#allocation11 + $0x18] sm:$0xff]
    %v384 = vld [vmem:[#allocation11 + $0x20] sm:$0xff]
    %v385 = vld [vmem:[#allocation11 + $0x28] sm:$0xff]
    %v386 = vld [vmem:[#allocation11 + $0x30] sm:$0xff]
    %v387 = vld [vmem:[#allocation11 + $0x38] sm:$0xff]
    %v388 = vld [vmem:[#allocation11 + $0x40] sm:$0xff]
    %v389 = vld [vmem:[#allocation11 + $0x48] sm:$0xff]
    %v390 = vld [vmem:[#allocation11 + $0x50] sm:$0xff]
    %v391 = vld [vmem:[#allocation11 + $0x58] sm:$0xff]
    %v392 = vld [vmem:[#allocation11 + $0x60] sm:$0xff]
    %v393 = vld [vmem:[#allocation11 + $0x68] sm:$0xff]
    %v394 = vld [vmem:[#allocation11 + $0x70] sm:$0xff]
    %v395 = vld [vmem:[#allocation11 + $0x78] sm:$0xff]
    %v396 = vld [vmem:[#allocation11 + $0x80] sm:$0xff]
    %v397 = vld [vmem:[#allocation11 + $0x88] sm:$0xff]
    %v398 = vld [vmem:[#allocation11 + $0x90] sm:$0xff]
    %v399 = vld [vmem:[#allocation11 + $0x98] sm:$0xff]
    %v400 = vld [vmem:[#allocation11 + $0xa0] sm:$0xff]
    %v401 = vld [vmem:[#allocation11 + $0xa8] sm:$0xff]
    %v402 = vld [vmem:[#allocation11 + $0xb0] sm:$0xff]
    %v403 = vld [vmem:[#allocation11 + $0xb8] sm:$0xff]
    %v404 = vld [vmem:[#allocation11 + $0xc0] sm:$0xff]
    %v405 = vld [vmem:[#allocation11 + $0xc8] sm:$0xff]
    %v406 = vld [vmem:[#allocation11 + $0xd0] sm:$0xff]
    %v407 = vld [vmem:[#allocation11 + $0xd8] sm:$0xff]
    %v408 = vld [vmem:[#allocation11 + $0xe0] sm:$0xff]
    %v409 = vld [vmem:[#allocation11 + $0xe8] sm:$0xff]
    %v410 = vld [vmem:[#allocation11 + $0xf0] sm:$0xff]
    %v411 = vld [vmem:[#allocation11 + $0xf8] sm:$0xff]
    %v412 = vld [vmem:[#allocation11 + $0x100] sm:$0xff]
    %v413 = vld [vmem:[#allocation11 + $0x108] sm:$0xff]
    %v414 = vld [vmem:[#allocation11 + $0x110] sm:$0xff]
    %v415 = vld [vmem:[#allocation11 + $0x118] sm:$0xff]
    %v416 = vld [vmem:[#allocation11 + $0x120] sm:$0xff]
    %v417 = vld [vmem:[#allocation11 + $0x128] sm:$0xff]
    %v418 = vld [vmem:[#allocation11 + $0x130] sm:$0xff]
    %v419 = vld [vmem:[#allocation11 + $0x138] sm:$0xff]
    %v420 = vld [vmem:[#allocation11 + $0x140] sm:$0xff]
    %v421 = vld [vmem:[#allocation11 + $0x148] sm:$0xff]
    %v422 = vld [vmem:[#allocation11 + $0x150] sm:$0xff]
    %v423 = vld [vmem:[#allocation11 + $0x158] sm:$0xff]
    %v424 = vld [vmem:[#allocation11 + $0x160] sm:$0xff]
    %v425 = vld [vmem:[#allocation11 + $0x168] sm:$0xff]
    %v426 = vld [vmem:[#allocation11 + $0x170] sm:$0xff]
    %v427 = vld [vmem:[#allocation11 + $0x178] sm:$0xff]
    %v428 = vld [vmem:[#allocation11 + $0x180] sm:$0xff]
    %v429 = vld [vmem:[#allocation11 + $0x188] sm:$0xff]
    %v430 = vld [vmem:[#allocation11 + $0x190] sm:$0xff]
    %v431 = vld [vmem:[#allocation11 + $0x198] sm:$0xff]
    %v432 = vld [vmem:[#allocation11 + $0x1a0] sm:$0xff]
    %v433 = vld [vmem:[#allocation11 + $0x1a8] sm:$0xff]
    %v434 = vld [vmem:[#allocation11 + $0x1b0] sm:$0xff]
    %v435 = vld [vmem:[#allocation11 + $0x1b8] sm:$0xff]
    %v436 = vld [vmem:[#allocation11 + $0x1c0] sm:$0xff]
    %v437 = vld [vmem:[#allocation11 + $0x1c8] sm:$0xff]
    %v438 = vld [vmem:[#allocation11 + $0x1d0] sm:$0xff]
    %v439 = vld [vmem:[#allocation11 + $0x1d8] sm:$0xff]
    %v440 = vld [vmem:[#allocation11 + $0x1e0] sm:$0xff]
    %v441 = vld [vmem:[#allocation11 + $0x1e8] sm:$0xff]
    %v442 = vld [vmem:[#allocation11 + $0x1f0] sm:$0xff]
    %v443 = vld [vmem:[#allocation11 + $0x1f8] sm:$0xff]
    %v444 = vld [vmem:[%s6] sm:$0xf]
    %v446 = vlaneseq
    %v447 = vshrl.u32 %v446, 7
    %v448 = vsub.s32 0, %v447
    %v449 = vrot.slane %v444, %v448
    %v450 = vlaneseq
    %v451 = vshrl.u32 %v450, 7
    %v452 = vsub.s32 1, %v451
    %v453 = vrot.slane %v444, %v452
    %v454 = vlaneseq
    %v455 = vshrl.u32 %v454, 7
    %v456 = vsub.s32 2, %v455
    %v457 = vrot.slane %v444, %v456
    %v458 = vlaneseq
    %v459 = vshrl.u32 %v458, 7
    %v460 = vsub.s32 3, %v459
    %v461 = vrot.slane %v444, %v460
    %v530 = vunpack.c.l.b16 %v380
    %v531 = vunpack.c.h.b16 %v380
    %v532 = vunpack.c.l.b16 %v381
    %v533 = vunpack.c.h.b16 %v381
    %v534 = vunpack.c.l.b16 %v382
    %v535 = vunpack.c.h.b16 %v382
    %v536 = vunpack.c.l.b16 %v383
    %v537 = vunpack.c.h.b16 %v383
    %v538 = vunpack.c.l.b16 %v384
    %v539 = vunpack.c.h.b16 %v384
    %v540 = vunpack.c.l.b16 %v385
    %v541 = vunpack.c.h.b16 %v385
    %v542 = vunpack.c.l.b16 %v386
    %v543 = vunpack.c.h.b16 %v386
    %v544 = vunpack.c.l.b16 %v387
    %v545 = vunpack.c.h.b16 %v387
    %v546 = vunpack.c.l.b16 %v388
    %v547 = vunpack.c.h.b16 %v388
    %v548 = vunpack.c.l.b16 %v389
    %v549 = vunpack.c.h.b16 %v389
    %v550 = vunpack.c.l.b16 %v390
    %v551 = vunpack.c.h.b16 %v390
    %v552 = vunpack.c.l.b16 %v391
    %v553 = vunpack.c.h.b16 %v391
    %v554 = vunpack.c.l.b16 %v392
    %v555 = vunpack.c.h.b16 %v392
    %v556 = vunpack.c.l.b16 %v393
    %v557 = vunpack.c.h.b16 %v393
    %v558 = vunpack.c.l.b16 %v394
    %v559 = vunpack.c.h.b16 %v394
    %v560 = vunpack.c.l.b16 %v395
    %v561 = vunpack.c.h.b16 %v395
    %v562 = vunpack.c.l.b16 %v396
    %v563 = vunpack.c.h.b16 %v396
    %v564 = vunpack.c.l.b16 %v397
    %v565 = vunpack.c.h.b16 %v397
    %v566 = vunpack.c.l.b16 %v398
    %v567 = vunpack.c.h.b16 %v398
    %v568 = vunpack.c.l.b16 %v399
    %v569 = vunpack.c.h.b16 %v399
    %v570 = vunpack.c.l.b16 %v400
    %v571 = vunpack.c.h.b16 %v400
    %v572 = vunpack.c.l.b16 %v401
    %v573 = vunpack.c.h.b16 %v401
    %v574 = vunpack.c.l.b16 %v402
    %v575 = vunpack.c.h.b16 %v402
    %v576 = vunpack.c.l.b16 %v403
    %v577 = vunpack.c.h.b16 %v403
    %v578 = vunpack.c.l.b16 %v404
    %v579 = vunpack.c.h.b16 %v404
    %v580 = vunpack.c.l.b16 %v405
    %v581 = vunpack.c.h.b16 %v405
    %v582 = vunpack.c.l.b16 %v406
    %v583 = vunpack.c.h.b16 %v406
    %v584 = vunpack.c.l.b16 %v407
    %v585 = vunpack.c.h.b16 %v407
    %v586 = vunpack.c.l.b16 %v408
    %v587 = vunpack.c.h.b16 %v408
    %v588 = vunpack.c.l.b16 %v409
    %v589 = vunpack.c.h.b16 %v409
    %v590 = vunpack.c.l.b16 %v410
    %v591 = vunpack.c.h.b16 %v410
    %v592 = vunpack.c.l.b16 %v411
    %v593 = vunpack.c.h.b16 %v411
    %v594 = vunpack.c.l.b16 %v412
    %v595 = vunpack.c.h.b16 %v412
    %v596 = vunpack.c.l.b16 %v413
    %v597 = vunpack.c.h.b16 %v413
    %v598 = vunpack.c.l.b16 %v414
    %v599 = vunpack.c.h.b16 %v414
    %v600 = vunpack.c.l.b16 %v415
    %v601 = vunpack.c.h.b16 %v415
    %v602 = vunpack.c.l.b16 %v416
    %v603 = vunpack.c.h.b16 %v416
    %v604 = vunpack.c.l.b16 %v417
    %v605 = vunpack.c.h.b16 %v417
    %v606 = vunpack.c.l.b16 %v418
    %v607 = vunpack.c.h.b16 %v418
    %v608 = vunpack.c.l.b16 %v419
    %v609 = vunpack.c.h.b16 %v419
    %v610 = vunpack.c.l.b16 %v420
    %v611 = vunpack.c.h.b16 %v420
    %v612 = vunpack.c.l.b16 %v421
    %v613 = vunpack.c.h.b16 %v421
    %v614 = vunpack.c.l.b16 %v422
    %v615 = vunpack.c.h.b16 %v422
    %v616 = vunpack.c.l.b16 %v423
    %v617 = vunpack.c.h.b16 %v423
    %v618 = vunpack.c.l.b16 %v424
    %v619 = vunpack.c.h.b16 %v424
    %v620 = vunpack.c.l.b16 %v425
    %v621 = vunpack.c.h.b16 %v425
    %v622 = vunpack.c.l.b16 %v426
    %v623 = vunpack.c.h.b16 %v426
    %v624 = vunpack.c.l.b16 %v427
    %v625 = vunpack.c.h.b16 %v427
    %v626 = vunpack.c.l.b16 %v428
    %v627 = vunpack.c.h.b16 %v428
    %v628 = vunpack.c.l.b16 %v429
    %v629 = vunpack.c.h.b16 %v429
    %v630 = vunpack.c.l.b16 %v430
    %v631 = vunpack.c.h.b16 %v430
    %v632 = vunpack.c.l.b16 %v431
    %v633 = vunpack.c.h.b16 %v431
    %v634 = vunpack.c.l.b16 %v432
    %v635 = vunpack.c.h.b16 %v432
    %v636 = vunpack.c.l.b16 %v433
    %v637 = vunpack.c.h.b16 %v433
    %v638 = vunpack.c.l.b16 %v434
    %v639 = vunpack.c.h.b16 %v434
    %v640 = vunpack.c.l.b16 %v435
    %v641 = vunpack.c.h.b16 %v435
    %v642 = vunpack.c.l.b16 %v436
    %v643 = vunpack.c.h.b16 %v436
    %v644 = vunpack.c.l.b16 %v437
    %v645 = vunpack.c.h.b16 %v437
    %v646 = vunpack.c.l.b16 %v438
    %v647 = vunpack.c.h.b16 %v438
    %v648 = vunpack.c.l.b16 %v439
    %v649 = vunpack.c.h.b16 %v439
    %v650 = vunpack.c.l.b16 %v440
    %v651 = vunpack.c.h.b16 %v440
    %v652 = vunpack.c.l.b16 %v441
    %v653 = vunpack.c.h.b16 %v441
    %v654 = vunpack.c.l.b16 %v442
    %v655 = vunpack.c.h.b16 %v442
    %v656 = vunpack.c.l.b16 %v443
    %v657 = vunpack.c.h.b16 %v443
    %v658 = vpack.c.b16 %v534, %v530
    %v659 = vpack.c.b16 %v535, %v531
    %v660 = vpack.c.b16 %v536, %v532
    %v661 = vpack.c.b16 %v537, %v533
    %v662 = vpack.c.b16 %v542, %v538
    %v663 = vpack.c.b16 %v543, %v539
    %v664 = vpack.c.b16 %v544, %v540
    %v665 = vpack.c.b16 %v545, %v541
    %v666 = vpack.c.b16 %v550, %v546
    %v667 = vpack.c.b16 %v551, %v547
    %v668 = vpack.c.b16 %v552, %v548
    %v669 = vpack.c.b16 %v553, %v549
    %v670 = vpack.c.b16 %v558, %v554
    %v671 = vpack.c.b16 %v559, %v555
    %v672 = vpack.c.b16 %v560, %v556
    %v673 = vpack.c.b16 %v561, %v557
    %v674 = vpack.c.b16 %v566, %v562
    %v675 = vpack.c.b16 %v567, %v563
    %v676 = vpack.c.b16 %v568, %v564
    %v677 = vpack.c.b16 %v569, %v565
    %v678 = vpack.c.b16 %v574, %v570
    %v679 = vpack.c.b16 %v575, %v571
    %v680 = vpack.c.b16 %v576, %v572
    %v681 = vpack.c.b16 %v577, %v573
    %v682 = vpack.c.b16 %v582, %v578
    %v683 = vpack.c.b16 %v583, %v579
    %v684 = vpack.c.b16 %v584, %v580
    %v685 = vpack.c.b16 %v585, %v581
    %v686 = vpack.c.b16 %v590, %v586
    %v687 = vpack.c.b16 %v591, %v587
    %v688 = vpack.c.b16 %v592, %v588
    %v689 = vpack.c.b16 %v593, %v589
    %v690 = vpack.c.b16 %v598, %v594
    %v691 = vpack.c.b16 %v599, %v595
    %v692 = vpack.c.b16 %v600, %v596
    %v693 = vpack.c.b16 %v601, %v597
    %v694 = vpack.c.b16 %v606, %v602
    %v695 = vpack.c.b16 %v607, %v603
    %v696 = vpack.c.b16 %v608, %v604
    %v697 = vpack.c.b16 %v609, %v605
    %v698 = vpack.c.b16 %v614, %v610
    %v699 = vpack.c.b16 %v615, %v611
    %v700 = vpack.c.b16 %v616, %v612
    %v701 = vpack.c.b16 %v617, %v613
    %v702 = vpack.c.b16 %v622, %v618
    %v703 = vpack.c.b16 %v623, %v619
    %v704 = vpack.c.b16 %v624, %v620
    %v705 = vpack.c.b16 %v625, %v621
    %v706 = vpack.c.b16 %v630, %v626
    %v707 = vpack.c.b16 %v631, %v627
    %v708 = vpack.c.b16 %v632, %v628
    %v709 = vpack.c.b16 %v633, %v629
    %v710 = vpack.c.b16 %v638, %v634
    %v711 = vpack.c.b16 %v639, %v635
    %v712 = vpack.c.b16 %v640, %v636
    %v713 = vpack.c.b16 %v641, %v637
    %v714 = vpack.c.b16 %v646, %v642
    %v715 = vpack.c.b16 %v647, %v643
    %v716 = vpack.c.b16 %v648, %v644
    %v717 = vpack.c.b16 %v649, %v645
    %v718 = vpack.c.b16 %v654, %v650
    %v719 = vpack.c.b16 %v655, %v651
    %v720 = vpack.c.b16 %v656, %v652
    %v721 = vpack.c.b16 %v657, %v653
    %786 = vmatprep.subr.bf16.mxu0 %v687
    %787 = vmatpush1.bf16.msra.mxu0 %v686
    %788 = vmatprep.subr.bf16.mxu0 %v683
    %789 = vmatpush1.bf16.msra.mxu0 %v682
    %790 = vmatprep.subr.bf16.mxu0 %v679
    %791 = vmatpush1.bf16.msra.mxu0 %v678
    %792 = vmatprep.subr.bf16.mxu0 %v675
    %793 = vmatpush1.bf16.msra.mxu0 %v674
    %794 = vmatprep.subr.bf16.mxu0 %v671
    %795 = vmatpush1.bf16.msra.mxu0 %v670
    %796 = vmatprep.subr.bf16.mxu0 %v667
    %797 = vmatpush1.bf16.msra.mxu0 %v666
    %798 = vmatprep.subr.bf16.mxu0 %v663
    %799 = vmatpush1.bf16.msra.mxu0 %v662
    %800 = vmatprep.subr.bf16.mxu0 %v659
    %801 = vmatpush1.bf16.msra.mxu0 %v658
    %802 = vmatprep.subr.bf16.mxu0 %v719
    %803 = vmatpush2.bf16.msra.mxu0 %v718
    %804 = vmatprep.subr.bf16.mxu0 %v715
    %805 = vmatpush2.bf16.msra.mxu0 %v714
    %806 = vmatprep.subr.bf16.mxu0 %v711
    %807 = vmatpush2.bf16.msra.mxu0 %v710
    %808 = vmatprep.subr.bf16.mxu0 %v707
    %809 = vmatpush2.bf16.msra.mxu0 %v706
    %810 = vmatprep.subr.bf16.mxu0 %v703
    %811 = vmatpush2.bf16.msra.mxu0 %v702
    %812 = vmatprep.subr.bf16.mxu0 %v699
    %813 = vmatpush2.bf16.msra.mxu0 %v698
    %814 = vmatprep.subr.bf16.mxu0 %v695
    %815 = vmatpush2.bf16.msra.mxu0 %v694
    %816 = vmatprep.subr.bf16.mxu0 %v691
    %817 = vmatpush2.bf16.msra.mxu0 %v690
    %818 = vmatprep.mubr.bf16.mxu0 %v379
    %819 = vmatmul.mubr.bf16.gmra.mxu0 %v378
    %v820 = vpop.f32.mrf.mxu0
    %v821 = vadd.f32 %v449, %v820
    %v822 = vpop.f32.mrf.mxu0
    %v823 = vadd.f32 %v453, %v822
    %v824 = vpop.f32.mrf.mxu0
    %v825 = vadd.f32 %v449, %v824
    %v826 = vpop.f32.mrf.mxu0
    %v827 = vadd.f32 %v453, %v826
    %828 = vdwg.mxu0
    %829 = vmatprep.subr.bf16.mxu0 %v689
    %830 = vmatpush1.bf16.msra.mxu0 %v688
    %831 = vmatprep.subr.bf16.mxu0 %v685
    %832 = vmatpush1.bf16.msra.mxu0 %v684
    %833 = vmatprep.subr.bf16.mxu0 %v681
    %834 = vmatpush1.bf16.msra.mxu0 %v680
    %835 = vmatprep.subr.bf16.mxu0 %v677
    %836 = vmatpush1.bf16.msra.mxu0 %v676
    %837 = vmatprep.subr.bf16.mxu0 %v673
    %838 = vmatpush1.bf16.msra.mxu0 %v672
    %839 = vmatprep.subr.bf16.mxu0 %v669
    %840 = vmatpush1.bf16.msra.mxu0 %v668
    %841 = vmatprep.subr.bf16.mxu0 %v665
    %842 = vmatpush1.bf16.msra.mxu0 %v664
    %843 = vmatprep.subr.bf16.mxu0 %v661
    %844 = vmatpush1.bf16.msra.mxu0 %v660
    %845 = vmatprep.subr.bf16.mxu0 %v721
    %846 = vmatpush2.bf16.msra.mxu0 %v720
    %847 = vmatprep.subr.bf16.mxu0 %v717
    %848 = vmatpush2.bf16.msra.mxu0 %v716
    %849 = vmatprep.subr.bf16.mxu0 %v713
    %850 = vmatpush2.bf16.msra.mxu0 %v712
    %851 = vmatprep.subr.bf16.mxu0 %v709
    %852 = vmatpush2.bf16.msra.mxu0 %v708
    %853 = vmatprep.subr.bf16.mxu0 %v705
    %854 = vmatpush2.bf16.msra.mxu0 %v704
    %855 = vmatprep.subr.bf16.mxu0 %v701
    %856 = vmatpush2.bf16.msra.mxu0 %v700
    %857 = vmatprep.subr.bf16.mxu0 %v697
    %858 = vmatpush2.bf16.msra.mxu0 %v696
    %859 = vmatprep.subr.bf16.mxu0 %v693
    %860 = vmatpush2.bf16.msra.mxu0 %v692
    %861 = vmatprep.mubr.bf16.mxu0 %v379
    %862 = vmatmul.mubr.bf16.gmra.mxu0 %v378
    %v863 = vpop.f32.mrf.mxu0
    %v864 = vadd.f32 %v457, %v863
    %v865 = vpop.f32.mrf.mxu0
    %v866 = vadd.f32 %v461, %v865
    %v867 = vpop.f32.mrf.mxu0
    %v868 = vadd.f32 %v457, %v867
    %v869 = vpop.f32.mrf.mxu0
    %v870 = vadd.f32 %v461, %v869
    %871 = vdwg.mxu0
    %v872 = vld [vmem:[%s7] sm:$0xf]
    %v873 = vld [vmem:[%s8] sm:$0xf]
    %v874 = vadd.f32 %v821, %v823
    %v875 = vadd.f32 %v874, %v864
    %v876 = vadd.f32 %v875, %v866
    %877 = vadd.xlane.f32.xlu0 %v876
    %v878 = vpop.xlane.xlu0 %877
    %v879 = vadd.f32 %v825, %v827
    %v880 = vadd.f32 %v879, %v868
    %v881 = vadd.f32 %v880, %v870
    %882 = vadd.xlane.f32.xlu0 %v881
    %v883 = vpop.xlane.xlu0 %882
    %v884 = vrcp.pop 512.0
    %v885 = vmul.f32 %v878, %v884
    %v886 = vmul.f32 %v883, %v884
    %v887 = vmul.f32 %v821, %v821
    %v888 = vmul.f32 %v823, %v823
    %v889 = vmul.f32 %v864, %v864
    %v890 = vmul.f32 %v866, %v866
    %v891 = vmul.f32 %v825, %v825
    %v892 = vmul.f32 %v827, %v827
    %v893 = vmul.f32 %v868, %v868
    %v894 = vmul.f32 %v870, %v870
    %v895 = vadd.f32 %v887, %v888
    %v896 = vadd.f32 %v895, %v889
    %v897 = vadd.f32 %v896, %v890
    %898 = vadd.xlane.f32.xlu0 %v897
    %v899 = vpop.xlane.xlu0 %898
    %v900 = vadd.f32 %v891, %v892
    %v901 = vadd.f32 %v900, %v893
    %v902 = vadd.f32 %v901, %v894
    %903 = vadd.xlane.f32.xlu0 %v902
    %v904 = vpop.xlane.xlu0 %903
    %v905 = vmul.f32 %v899, %v884
    %v906 = vmul.f32 %v904, %v884
    %v907 = vmul.f32 %v885, %v885
    %v908 = vmul.f32 %v886, %v886
    %v909 = vsub.f32 %v905, %v907
    %v910 = vsub.f32 %v906, %v908
    %v911 = vmax.f32 %v909, 0.0
    %v912 = vmax.f32 %v910, 0.0
    %v913 = vsub.f32 %v821, %v885
    %v914 = vsub.f32 %v823, %v885
    %v915 = vsub.f32 %v864, %v885
    %v916 = vsub.f32 %v866, %v885
    %v917 = vsub.f32 %v825, %v886
    %v918 = vsub.f32 %v827, %v886
    %v919 = vsub.f32 %v868, %v886
    %v920 = vsub.f32 %v870, %v886
    %v921 = vadd.f32 %v911, 1e-05
    %v922 = vadd.f32 %v912, 1e-05
    %v923 = vrsqrt.pop %v921
    %v924 = vrsqrt.pop %v922
    %v925 = vmul.f32 %v913, %v923
    %v926 = vmul.f32 %v914, %v923
    %v927 = vmul.f32 %v915, %v923
    %v928 = vmul.f32 %v916, %v923
    %v929 = vmul.f32 %v917, %v924
    %v930 = vmul.f32 %v918, %v924
    %v931 = vmul.f32 %v919, %v924
    %v932 = vmul.f32 %v920, %v924
    %v934 = vlaneseq
    %v935 = vshrl.u32 %v934, 7
    %v936 = vsub.s32 0, %v935
    %v937 = vrot.slane %v872, %v936
    %v938 = vlaneseq
    %v939 = vshrl.u32 %v938, 7
    %v940 = vsub.s32 1, %v939
    %v941 = vrot.slane %v872, %v940
    %v942 = vlaneseq
    %v943 = vshrl.u32 %v942, 7
    %v944 = vsub.s32 2, %v943
    %v945 = vrot.slane %v872, %v944
    %v946 = vlaneseq
    %v947 = vshrl.u32 %v946, 7
    %v948 = vsub.s32 3, %v947
    %v949 = vrot.slane %v872, %v948
    %v954 = vmul.f32 %v925, %v937
    %v955 = vmul.f32 %v926, %v941
    %v956 = vmul.f32 %v927, %v945
    %v957 = vmul.f32 %v928, %v949
    %v958 = vmul.f32 %v929, %v937
    %v959 = vmul.f32 %v930, %v941
    %v960 = vmul.f32 %v931, %v945
    %v961 = vmul.f32 %v932, %v949
    %v963 = vlaneseq
    %v964 = vshrl.u32 %v963, 7
    %v965 = vsub.s32 0, %v964
    %v966 = vrot.slane %v873, %v965
    %v967 = vlaneseq
    %v968 = vshrl.u32 %v967, 7
    %v969 = vsub.s32 1, %v968
    %v970 = vrot.slane %v873, %v969
    %v971 = vlaneseq
    %v972 = vshrl.u32 %v971, 7
    %v973 = vsub.s32 2, %v972
    %v974 = vrot.slane %v873, %v973
    %v975 = vlaneseq
    %v976 = vshrl.u32 %v975, 7
    %v977 = vsub.s32 3, %v976
    %v978 = vrot.slane %v873, %v977
    %v983 = vadd.f32 %v954, %v966
    %v984 = vadd.f32 %v955, %v970
    %v985 = vadd.f32 %v956, %v974
    %v986 = vadd.f32 %v957, %v978
    %v987 = vadd.f32 %v958, %v966
    %v988 = vadd.f32 %v959, %v970
    %v989 = vadd.f32 %v960, %v974
    %v990 = vadd.f32 %v961, %v978
    %v991 = vmax.f32 %v983, 0.0
    %v992 = vmax.f32 %v984, 0.0
    %v993 = vmax.f32 %v985, 0.0
    %v994 = vmax.f32 %v986, 0.0
    %v995 = vmax.f32 %v987, 0.0
    %v996 = vmax.f32 %v988, 0.0
    %v997 = vmax.f32 %v989, 0.0
    %v998 = vmax.f32 %v990, 0.0
    %v999 = vpack.c.bf16 %v995, %v991
    %v1000 = vpack.c.bf16 %v996, %v992
    %v1001 = vpack.c.bf16 %v997, %v993
    %v1002 = vpack.c.bf16 %v998, %v994
    %v1003 = vld [vmem:[#allocation13] sm:$0xff]
    %v1004 = vld [vmem:[#allocation13 + $0x8] sm:$0xff]
    %v1005 = vld [vmem:[#allocation13 + $0x10] sm:$0xff]
    %v1006 = vld [vmem:[#allocation13 + $0x18] sm:$0xff]
    %v1007 = vld [vmem:[#allocation13 + $0x20] sm:$0xff]
    %v1008 = vld [vmem:[#allocation13 + $0x28] sm:$0xff]
    %v1009 = vld [vmem:[#allocation13 + $0x30] sm:$0xff]
    %v1010 = vld [vmem:[#allocation13 + $0x38] sm:$0xff]
    %v1011 = vld [vmem:[#allocation13 + $0x40] sm:$0xff]
    %v1012 = vld [vmem:[#allocation13 + $0x48] sm:$0xff]
    %v1013 = vld [vmem:[#allocation13 + $0x50] sm:$0xff]
    %v1014 = vld [vmem:[#allocation13 + $0x58] sm:$0xff]
    %v1015 = vld [vmem:[#allocation13 + $0x60] sm:$0xff]
    %v1016 = vld [vmem:[#allocation13 + $0x68] sm:$0xff]
    %v1017 = vld [vmem:[#allocation13 + $0x70] sm:$0xff]
    %v1018 = vld [vmem:[#allocation13 + $0x78] sm:$0xff]
    %v1019 = vld [vmem:[#allocation13 + $0x80] sm:$0xff]
    %v1020 = vld [vmem:[#allocation13 + $0x88] sm:$0xff]
    %v1021 = vld [vmem:[#allocation13 + $0x90] sm:$0xff]
    %v1022 = vld [vmem:[#allocation13 + $0x98] sm:$0xff]
    %v1023 = vld [vmem:[#allocation13 + $0xa0] sm:$0xff]
    %v1024 = vld [vmem:[#allocation13 + $0xa8] sm:$0xff]
    %v1025 = vld [vmem:[#allocation13 + $0xb0] sm:$0xff]
    %v1026 = vld [vmem:[#allocation13 + $0xb8] sm:$0xff]
    %v1027 = vld [vmem:[#allocation13 + $0xc0] sm:$0xff]
    %v1028 = vld [vmem:[#allocation13 + $0xc8] sm:$0xff]
    %v1029 = vld [vmem:[#allocation13 + $0xd0] sm:$0xff]
    %v1030 = vld [vmem:[#allocation13 + $0xd8] sm:$0xff]
    %v1031 = vld [vmem:[#allocation13 + $0xe0] sm:$0xff]
    %v1032 = vld [vmem:[#allocation13 + $0xe8] sm:$0xff]
    %v1033 = vld [vmem:[#allocation13 + $0xf0] sm:$0xff]
    %v1034 = vld [vmem:[#allocation13 + $0xf8] sm:$0xff]
    %v1035 = vld [vmem:[#allocation13 + $0x100] sm:$0xff]
    %v1036 = vld [vmem:[#allocation13 + $0x108] sm:$0xff]
    %v1037 = vld [vmem:[#allocation13 + $0x110] sm:$0xff]
    %v1038 = vld [vmem:[#allocation13 + $0x118] sm:$0xff]
    %v1039 = vld [vmem:[#allocation13 + $0x120] sm:$0xff]
    %v1040 = vld [vmem:[#allocation13 + $0x128] sm:$0xff]
    %v1041 = vld [vmem:[#allocation13 + $0x130] sm:$0xff]
    %v1042 = vld [vmem:[#allocation13 + $0x138] sm:$0xff]
    %v1043 = vld [vmem:[#allocation13 + $0x140] sm:$0xff]
    %v1044 = vld [vmem:[#allocation13 + $0x148] sm:$0xff]
    %v1045 = vld [vmem:[#allocation13 + $0x150] sm:$0xff]
    %v1046 = vld [vmem:[#allocation13 + $0x158] sm:$0xff]
    %v1047 = vld [vmem:[#allocation13 + $0x160] sm:$0xff]
    %v1048 = vld [vmem:[#allocation13 + $0x168] sm:$0xff]
    %v1049 = vld [vmem:[#allocation13 + $0x170] sm:$0xff]
    %v1050 = vld [vmem:[#allocation13 + $0x178] sm:$0xff]
    %v1051 = vld [vmem:[#allocation13 + $0x180] sm:$0xff]
    %v1052 = vld [vmem:[#allocation13 + $0x188] sm:$0xff]
    %v1053 = vld [vmem:[#allocation13 + $0x190] sm:$0xff]
    %v1054 = vld [vmem:[#allocation13 + $0x198] sm:$0xff]
    %v1055 = vld [vmem:[#allocation13 + $0x1a0] sm:$0xff]
    %v1056 = vld [vmem:[#allocation13 + $0x1a8] sm:$0xff]
    %v1057 = vld [vmem:[#allocation13 + $0x1b0] sm:$0xff]
    %v1058 = vld [vmem:[#allocation13 + $0x1b8] sm:$0xff]
    %v1059 = vld [vmem:[#allocation13 + $0x1c0] sm:$0xff]
    %v1060 = vld [vmem:[#allocation13 + $0x1c8] sm:$0xff]
    %v1061 = vld [vmem:[#allocation13 + $0x1d0] sm:$0xff]
    %v1062 = vld [vmem:[#allocation13 + $0x1d8] sm:$0xff]
    %v1063 = vld [vmem:[#allocation13 + $0x1e0] sm:$0xff]
    %v1064 = vld [vmem:[#allocation13 + $0x1e8] sm:$0xff]
    %v1065 = vld [vmem:[#allocation13 + $0x1f0] sm:$0xff]
    %v1066 = vld [vmem:[#allocation13 + $0x1f8] sm:$0xff]
    %v1067 = vld [vmem:[%s10] sm:$0x3]
    %v1069 = vlaneseq
    %v1070 = vshrl.u32 %v1069, 7
    %v1071 = vsub.s32 0, %v1070
    %v1072 = vrot.slane %v1067, %v1071
    %v1073 = vlaneseq
    %v1074 = vshrl.u32 %v1073, 7
    %v1075 = vsub.s32 1, %v1074
    %v1076 = vrot.slane %v1067, %v1075
    %v1143 = vunpack.c.l.b16 %v1003
    %v1144 = vunpack.c.h.b16 %v1003
    %v1145 = vunpack.c.l.b16 %v1004
    %v1146 = vunpack.c.h.b16 %v1004
    %v1147 = vunpack.c.l.b16 %v1005
    %v1148 = vunpack.c.h.b16 %v1005
    %v1149 = vunpack.c.l.b16 %v1006
    %v1150 = vunpack.c.h.b16 %v1006
    %v1151 = vunpack.c.l.b16 %v1007
    %v1152 = vunpack.c.h.b16 %v1007
    %v1153 = vunpack.c.l.b16 %v1008
    %v1154 = vunpack.c.h.b16 %v1008
    %v1155 = vunpack.c.l.b16 %v1009
    %v1156 = vunpack.c.h.b16 %v1009
    %v1157 = vunpack.c.l.b16 %v1010
    %v1158 = vunpack.c.h.b16 %v1010
    %v1159 = vunpack.c.l.b16 %v1011
    %v1160 = vunpack.c.h.b16 %v1011
    %v1161 = vunpack.c.l.b16 %v1012
    %v1162 = vunpack.c.h.b16 %v1012
    %v1163 = vunpack.c.l.b16 %v1013
    %v1164 = vunpack.c.h.b16 %v1013
    %v1165 = vunpack.c.l.b16 %v1014
    %v1166 = vunpack.c.h.b16 %v1014
    %v1167 = vunpack.c.l.b16 %v1015
    %v1168 = vunpack.c.h.b16 %v1015
    %v1169 = vunpack.c.l.b16 %v1016
    %v1170 = vunpack.c.h.b16 %v1016
    %v1171 = vunpack.c.l.b16 %v1017
    %v1172 = vunpack.c.h.b16 %v1017
    %v1173 = vunpack.c.l.b16 %v1018
    %v1174 = vunpack.c.h.b16 %v1018
    %v1175 = vunpack.c.l.b16 %v1019
    %v1176 = vunpack.c.h.b16 %v1019
    %v1177 = vunpack.c.l.b16 %v1020
    %v1178 = vunpack.c.h.b16 %v1020
    %v1179 = vunpack.c.l.b16 %v1021
    %v1180 = vunpack.c.h.b16 %v1021
    %v1181 = vunpack.c.l.b16 %v1022
    %v1182 = vunpack.c.h.b16 %v1022
    %v1183 = vunpack.c.l.b16 %v1023
    %v1184 = vunpack.c.h.b16 %v1023
    %v1185 = vunpack.c.l.b16 %v1024
    %v1186 = vunpack.c.h.b16 %v1024
    %v1187 = vunpack.c.l.b16 %v1025
    %v1188 = vunpack.c.h.b16 %v1025
    %v1189 = vunpack.c.l.b16 %v1026
    %v1190 = vunpack.c.h.b16 %v1026
    %v1191 = vunpack.c.l.b16 %v1027
    %v1192 = vunpack.c.h.b16 %v1027
    %v1193 = vunpack.c.l.b16 %v1028
    %v1194 = vunpack.c.h.b16 %v1028
    %v1195 = vunpack.c.l.b16 %v1029
    %v1196 = vunpack.c.h.b16 %v1029
    %v1197 = vunpack.c.l.b16 %v1030
    %v1198 = vunpack.c.h.b16 %v1030
    %v1199 = vunpack.c.l.b16 %v1031
    %v1200 = vunpack.c.h.b16 %v1031
    %v1201 = vunpack.c.l.b16 %v1032
    %v1202 = vunpack.c.h.b16 %v1032
    %v1203 = vunpack.c.l.b16 %v1033
    %v1204 = vunpack.c.h.b16 %v1033
    %v1205 = vunpack.c.l.b16 %v1034
    %v1206 = vunpack.c.h.b16 %v1034
    %v1207 = vunpack.c.l.b16 %v1035
    %v1208 = vunpack.c.h.b16 %v1035
    %v1209 = vunpack.c.l.b16 %v1036
    %v1210 = vunpack.c.h.b16 %v1036
    %v1211 = vunpack.c.l.b16 %v1037
    %v1212 = vunpack.c.h.b16 %v1037
    %v1213 = vunpack.c.l.b16 %v1038
    %v1214 = vunpack.c.h.b16 %v1038
    %v1215 = vunpack.c.l.b16 %v1039
    %v1216 = vunpack.c.h.b16 %v1039
    %v1217 = vunpack.c.l.b16 %v1040
    %v1218 = vunpack.c.h.b16 %v1040
    %v1219 = vunpack.c.l.b16 %v1041
    %v1220 = vunpack.c.h.b16 %v1041
    %v1221 = vunpack.c.l.b16 %v1042
    %v1222 = vunpack.c.h.b16 %v1042
    %v1223 = vunpack.c.l.b16 %v1043
    %v1224 = vunpack.c.h.b16 %v1043
    %v1225 = vunpack.c.l.b16 %v1044
    %v1226 = vunpack.c.h.b16 %v1044
    %v1227 = vunpack.c.l.b16 %v1045
    %v1228 = vunpack.c.h.b16 %v1045
    %v1229 = vunpack.c.l.b16 %v1046
    %v1230 = vunpack.c.h.b16 %v1046
    %v1231 = vunpack.c.l.b16 %v1047
    %v1232 = vunpack.c.h.b16 %v1047
    %v1233 = vunpack.c.l.b16 %v1048
    %v1234 = vunpack.c.h.b16 %v1048
    %v1235 = vunpack.c.l.b16 %v1049
    %v1236 = vunpack.c.h.b16 %v1049
    %v1237 = vunpack.c.l.b16 %v1050
    %v1238 = vunpack.c.h.b16 %v1050
    %v1239 = vunpack.c.l.b16 %v1051
    %v1240 = vunpack.c.h.b16 %v1051
    %v1241 = vunpack.c.l.b16 %v1052
    %v1242 = vunpack.c.h.b16 %v1052
    %v1243 = vunpack.c.l.b16 %v1053
    %v1244 = vunpack.c.h.b16 %v1053
    %v1245 = vunpack.c.l.b16 %v1054
    %v1246 = vunpack.c.h.b16 %v1054
    %v1247 = vunpack.c.l.b16 %v1055
    %v1248 = vunpack.c.h.b16 %v1055
    %v1249 = vunpack.c.l.b16 %v1056
    %v1250 = vunpack.c.h.b16 %v1056
    %v1251 = vunpack.c.l.b16 %v1057
    %v1252 = vunpack.c.h.b16 %v1057
    %v1253 = vunpack.c.l.b16 %v1058
    %v1254 = vunpack.c.h.b16 %v1058
    %v1255 = vunpack.c.l.b16 %v1059
    %v1256 = vunpack.c.h.b16 %v1059
    %v1257 = vunpack.c.l.b16 %v1060
    %v1258 = vunpack.c.h.b16 %v1060
    %v1259 = vunpack.c.l.b16 %v1061
    %v1260 = vunpack.c.h.b16 %v1061
    %v1261 = vunpack.c.l.b16 %v1062
    %v1262 = vunpack.c.h.b16 %v1062
    %v1263 = vunpack.c.l.b16 %v1063
    %v1264 = vunpack.c.h.b16 %v1063
    %v1265 = vunpack.c.l.b16 %v1064
    %v1266 = vunpack.c.h.b16 %v1064
    %v1267 = vunpack.c.l.b16 %v1065
    %v1268 = vunpack.c.h.b16 %v1065
    %v1269 = vunpack.c.l.b16 %v1066
    %v1270 = vunpack.c.h.b16 %v1066
    %v1271 = vpack.c.b16 %v1145, %v1143
    %v1272 = vpack.c.b16 %v1146, %v1144
    %v1273 = vpack.c.b16 %v1149, %v1147
    %v1274 = vpack.c.b16 %v1150, %v1148
    %v1275 = vpack.c.b16 %v1153, %v1151
    %v1276 = vpack.c.b16 %v1154, %v1152
    %v1277 = vpack.c.b16 %v1157, %v1155
    %v1278 = vpack.c.b16 %v1158, %v1156
    %v1279 = vpack.c.b16 %v1161, %v1159
    %v1280 = vpack.c.b16 %v1162, %v1160
    %v1281 = vpack.c.b16 %v1165, %v1163
    %v1282 = vpack.c.b16 %v1166, %v1164
    %v1283 = vpack.c.b16 %v1169, %v1167
    %v1284 = vpack.c.b16 %v1170, %v1168
    %v1285 = vpack.c.b16 %v1173, %v1171
    %v1286 = vpack.c.b16 %v1174, %v1172
    %v1287 = vpack.c.b16 %v1177, %v1175
    %v1288 = vpack.c.b16 %v1178, %v1176
    %v1289 = vpack.c.b16 %v1181, %v1179
    %v1290 = vpack.c.b16 %v1182, %v1180
    %v1291 = vpack.c.b16 %v1185, %v1183
    %v1292 = vpack.c.b16 %v1186, %v1184
    %v1293 = vpack.c.b16 %v1189, %v1187
    %v1294 = vpack.c.b16 %v1190, %v1188
    %v1295 = vpack.c.b16 %v1193, %v1191
    %v1296 = vpack.c.b16 %v1194, %v1192
    %v1297 = vpack.c.b16 %v1197, %v1195
    %v1298 = vpack.c.b16 %v1198, %v1196
    %v1299 = vpack.c.b16 %v1201, %v1199
    %v1300 = vpack.c.b16 %v1202, %v1200
    %v1301 = vpack.c.b16 %v1205, %v1203
    %v1302 = vpack.c.b16 %v1206, %v1204
    %v1303 = vpack.c.b16 %v1209, %v1207
    %v1304 = vpack.c.b16 %v1210, %v1208
    %v1305 = vpack.c.b16 %v1213, %v1211
    %v1306 = vpack.c.b16 %v1214, %v1212
    %v1307 = vpack.c.b16 %v1217, %v1215
    %v1308 = vpack.c.b16 %v1218, %v1216
    %v1309 = vpack.c.b16 %v1221, %v1219
    %v1310 = vpack.c.b16 %v1222, %v1220
    %v1311 = vpack.c.b16 %v1225, %v1223
    %v1312 = vpack.c.b16 %v1226, %v1224
    %v1313 = vpack.c.b16 %v1229, %v1227
    %v1314 = vpack.c.b16 %v1230, %v1228
    %v1315 = vpack.c.b16 %v1233, %v1231
    %v1316 = vpack.c.b16 %v1234, %v1232
    %v1317 = vpack.c.b16 %v1237, %v1235
    %v1318 = vpack.c.b16 %v1238, %v1236
    %v1319 = vpack.c.b16 %v1241, %v1239
    %v1320 = vpack.c.b16 %v1242, %v1240
    %v1321 = vpack.c.b16 %v1245, %v1243
    %v1322 = vpack.c.b16 %v1246, %v1244
    %v1323 = vpack.c.b16 %v1249, %v1247
    %v1324 = vpack.c.b16 %v1250, %v1248
    %v1325 = vpack.c.b16 %v1253, %v1251
    %v1326 = vpack.c.b16 %v1254, %v1252
    %v1327 = vpack.c.b16 %v1257, %v1255
    %v1328 = vpack.c.b16 %v1258, %v1256
    %v1329 = vpack.c.b16 %v1261, %v1259
    %v1330 = vpack.c.b16 %v1262, %v1260
    %v1331 = vpack.c.b16 %v1265, %v1263
    %v1332 = vpack.c.b16 %v1266, %v1264
    %v1333 = vpack.c.b16 %v1269, %v1267
    %v1334 = vpack.c.b16 %v1270, %v1268
    %1399 = vmatprep.subr.bf16.mxu0 %v1286
    %1400 = vmatpush1.bf16.msra.mxu0 %v1285
    %1401 = vmatprep.subr.bf16.mxu0 %v1284
    %1402 = vmatpush1.bf16.msra.mxu0 %v1283
    %1403 = vmatprep.subr.bf16.mxu0 %v1282
    %1404 = vmatpush1.bf16.msra.mxu0 %v1281
    %1405 = vmatprep.subr.bf16.mxu0 %v1280
    %1406 = vmatpush1.bf16.msra.mxu0 %v1279
    %1407 = vmatprep.subr.bf16.mxu0 %v1278
    %1408 = vmatpush1.bf16.msra.mxu0 %v1277
    %1409 = vmatprep.subr.bf16.mxu0 %v1276
    %1410 = vmatpush1.bf16.msra.mxu0 %v1275
    %1411 = vmatprep.subr.bf16.mxu0 %v1274
    %1412 = vmatpush1.bf16.msra.mxu0 %v1273
    %1413 = vmatprep.subr.bf16.mxu0 %v1272
    %1414 = vmatpush1.bf16.msra.mxu0 %v1271
    %1415 = vmatprep.subr.bf16.mxu0 %v1302
    %1416 = vmatpush2.bf16.msra.mxu0 %v1301
    %1417 = vmatprep.subr.bf16.mxu0 %v1300
    %1418 = vmatpush2.bf16.msra.mxu0 %v1299
    %1419 = vmatprep.subr.bf16.mxu0 %v1298
    %1420 = vmatpush2.bf16.msra.mxu0 %v1297
    %1421 = vmatprep.subr.bf16.mxu0 %v1296
    %1422 = vmatpush2.bf16.msra.mxu0 %v1295
    %1423 = vmatprep.subr.bf16.mxu0 %v1294
    %1424 = vmatpush2.bf16.msra.mxu0 %v1293
    %1425 = vmatprep.subr.bf16.mxu0 %v1292
    %1426 = vmatpush2.bf16.msra.mxu0 %v1291
    %1427 = vmatprep.subr.bf16.mxu0 %v1290
    %1428 = vmatpush2.bf16.msra.mxu0 %v1289
    %1429 = vmatprep.subr.bf16.mxu0 %v1288
    %1430 = vmatpush2.bf16.msra.mxu0 %v1287
    %1431 = vmatprep.mubr.bf16.mxu0 %v1000
    %1432 = vmatmul.mubr.bf16.gmra.mxu0 %v999
    %v1433 = vpop.f32.mrf.mxu0
    %v1434 = vadd.f32 %v1072, %v1433
    %v1435 = vpop.f32.mrf.mxu0
    %v1436 = vadd.f32 %v1076, %v1435
    %v1437 = vpop.f32.mrf.mxu0
    %v1438 = vadd.f32 %v1072, %v1437
    %v1439 = vpop.f32.mrf.mxu0
    %v1440 = vadd.f32 %v1076, %v1439
    %1441 = vdwg.mxu0
    %1442 = vmatprep.subr.bf16.mxu0 %v1318
    %1443 = vmatpush1.bf16.msra.mxu0 %v1317
    %1444 = vmatprep.subr.bf16.mxu0 %v1316
    %1445 = vmatpush1.bf16.msra.mxu0 %v1315
    %1446 = vmatprep.subr.bf16.mxu0 %v1314
    %1447 = vmatpush1.bf16.msra.mxu0 %v1313
    %1448 = vmatprep.subr.bf16.mxu0 %v1312
    %1449 = vmatpush1.bf16.msra.mxu0 %v1311
    %1450 = vmatprep.subr.bf16.mxu0 %v1310
    %1451 = vmatpush1.bf16.msra.mxu0 %v1309
    %1452 = vmatprep.subr.bf16.mxu0 %v1308
    %1453 = vmatpush1.bf16.msra.mxu0 %v1307
    %1454 = vmatprep.subr.bf16.mxu0 %v1306
    %1455 = vmatpush1.bf16.msra.mxu0 %v1305
    %1456 = vmatprep.subr.bf16.mxu0 %v1304
    %1457 = vmatpush1.bf16.msra.mxu0 %v1303
    %1458 = vmatprep.subr.bf16.mxu0 %v1334
    %1459 = vmatpush2.bf16.msra.mxu0 %v1333
    %1460 = vmatprep.subr.bf16.mxu0 %v1332
    %1461 = vmatpush2.bf16.msra.mxu0 %v1331
    %1462 = vmatprep.subr.bf16.mxu0 %v1330
    %1463 = vmatpush2.bf16.msra.mxu0 %v1329
    %1464 = vmatprep.subr.bf16.mxu0 %v1328
    %1465 = vmatpush2.bf16.msra.mxu0 %v1327
    %1466 = vmatprep.subr.bf16.mxu0 %v1326
    %1467 = vmatpush2.bf16.msra.mxu0 %v1325
    %1468 = vmatprep.subr.bf16.mxu0 %v1324
    %1469 = vmatpush2.bf16.msra.mxu0 %v1323
    %1470 = vmatprep.subr.bf16.mxu0 %v1322
    %1471 = vmatpush2.bf16.msra.mxu0 %v1321
    %1472 = vmatprep.subr.bf16.mxu0 %v1320
    %1473 = vmatpush2.bf16.msra.mxu0 %v1319
    %1474 = vmatprep.mubr.bf16.mxu0 %v1002
    %1475 = vmatmul.mubr.bf16.gmra.mxu0 %v1001
    %v1476 = vpop.f32.mrf.mxu0
    %v1477 = vadd.f32 %v1434, %v1476
    %v1478 = vpop.f32.mrf.mxu0
    %v1479 = vadd.f32 %v1436, %v1478
    %v1480 = vpop.f32.mrf.mxu0
    %v1481 = vadd.f32 %v1438, %v1480
    %v1482 = vpop.f32.mrf.mxu0
    %v1483 = vadd.f32 %v1440, %v1482
    %1484 = vdwg.mxu0
    %v1485 = vld [vmem:[%s11] sm:$0x3]
    %v1486 = vld [vmem:[%s12] sm:$0x3]
    %v1487 = vadd.f32 %v1477, %v1479
    %1488 = vadd.xlane.f32.xlu0 %v1487
    %v1489 = vpop.xlane.xlu0 %1488
    %v1490 = vadd.f32 %v1481, %v1483
    %1491 = vadd.xlane.f32.xlu0 %v1490
    %v1492 = vpop.xlane.xlu0 %1491
    %v1493 = vmul.f32 %v1489, %v311
    %v1494 = vmul.f32 %v1492, %v311
    %v1495 = vmul.f32 %v1477, %v1477
    %v1496 = vmul.f32 %v1479, %v1479
    %v1497 = vmul.f32 %v1481, %v1481
    %v1498 = vmul.f32 %v1483, %v1483
    %v1499 = vadd.f32 %v1495, %v1496
    %1500 = vadd.xlane.f32.xlu0 %v1499
    %v1501 = vpop.xlane.xlu0 %1500
    %v1502 = vadd.f32 %v1497, %v1498
    %1503 = vadd.xlane.f32.xlu0 %v1502
    %v1504 = vpop.xlane.xlu0 %1503
    %v1505 = vmul.f32 %v1501, %v311
    %v1506 = vmul.f32 %v1504, %v311
    %v1507 = vmul.f32 %v1493, %v1493
    %v1508 = vmul.f32 %v1494, %v1494
    %v1509 = vsub.f32 %v1505, %v1507
    %v1510 = vsub.f32 %v1506, %v1508
    %v1511 = vmax.f32 %v1509, 0.0
    %v1512 = vmax.f32 %v1510, 0.0
    %v1513 = vsub.f32 %v1477, %v1493
    %v1514 = vsub.f32 %v1479, %v1493
    %v1515 = vsub.f32 %v1481, %v1494
    %v1516 = vsub.f32 %v1483, %v1494
    %v1517 = vadd.f32 %v1511, 1e-05
    %v1518 = vadd.f32 %v1512, 1e-05
    %v1519 = vrsqrt.pop %v1517
    %v1520 = vrsqrt.pop %v1518
    %v1521 = vmul.f32 %v1513, %v1519
    %v1522 = vmul.f32 %v1514, %v1519
    %v1523 = vmul.f32 %v1515, %v1520
    %v1524 = vmul.f32 %v1516, %v1520
    %v1526 = vlaneseq
    %v1527 = vshrl.u32 %v1526, 7
    %v1528 = vsub.s32 0, %v1527
    %v1529 = vrot.slane %v1485, %v1528
    %v1530 = vlaneseq
    %v1531 = vshrl.u32 %v1530, 7
    %v1532 = vsub.s32 1, %v1531
    %v1533 = vrot.slane %v1485, %v1532
    %v1536 = vmul.f32 %v1521, %v1529
    %v1537 = vmul.f32 %v1522, %v1533
    %v1538 = vmul.f32 %v1523, %v1529
    %v1539 = vmul.f32 %v1524, %v1533
    %v1541 = vlaneseq
    %v1542 = vshrl.u32 %v1541, 7
    %v1543 = vsub.s32 0, %v1542
    %v1544 = vrot.slane %v1486, %v1543
    %v1545 = vlaneseq
    %v1546 = vshrl.u32 %v1545, 7
    %v1547 = vsub.s32 1, %v1546
    %v1548 = vrot.slane %v1486, %v1547
    %v1551 = vadd.f32 %v1536, %v1544
    %v1552 = vadd.f32 %v1537, %v1548
    %v1553 = vadd.f32 %v1538, %v1544
    %v1554 = vadd.f32 %v1539, %v1548
    %v1555 = vmax.f32 %v1551, 0.0
    %v1556 = vmax.f32 %v1552, 0.0
    %v1557 = vmax.f32 %v1553, 0.0
    %v1558 = vmax.f32 %v1554, 0.0
    %v1559 = vpack.c.bf16 %v1557, %v1555
    %v1560 = vpack.c.bf16 %v1558, %v1556
    %v1561 = vld [vmem:[#allocation14] sm:$0xf]
    %v1562 = vld [vmem:[#allocation14 + $0x4] sm:$0xf]
    %v1563 = vld [vmem:[#allocation14 + $0x8] sm:$0xf]
    %v1564 = vld [vmem:[#allocation14 + $0xc] sm:$0xf]
    %v1565 = vld [vmem:[#allocation14 + $0x10] sm:$0xf]
    %v1566 = vld [vmem:[#allocation14 + $0x14] sm:$0xf]
    %v1567 = vld [vmem:[#allocation14 + $0x18] sm:$0xf]
    %v1568 = vld [vmem:[#allocation14 + $0x1c] sm:$0xf]
    %v1569 = vld [vmem:[#allocation14 + $0x20] sm:$0xf]
    %v1570 = vld [vmem:[#allocation14 + $0x24] sm:$0xf]
    %v1571 = vld [vmem:[#allocation14 + $0x28] sm:$0xf]
    %v1572 = vld [vmem:[#allocation14 + $0x2c] sm:$0xf]
    %v1573 = vld [vmem:[#allocation14 + $0x30] sm:$0xf]
    %v1574 = vld [vmem:[#allocation14 + $0x34] sm:$0xf]
    %v1575 = vld [vmem:[#allocation14 + $0x38] sm:$0xf]
    %v1576 = vld [vmem:[#allocation14 + $0x3c] sm:$0xf]
    %v1577 = vld [vmem:[#allocation14 + $0x40] sm:$0xf]
    %v1578 = vld [vmem:[#allocation14 + $0x44] sm:$0xf]
    %v1579 = vld [vmem:[#allocation14 + $0x48] sm:$0xf]
    %v1580 = vld [vmem:[#allocation14 + $0x4c] sm:$0xf]
    %v1581 = vld [vmem:[#allocation14 + $0x50] sm:$0xf]
    %v1582 = vld [vmem:[#allocation14 + $0x54] sm:$0xf]
    %v1583 = vld [vmem:[#allocation14 + $0x58] sm:$0xf]
    %v1584 = vld [vmem:[#allocation14 + $0x5c] sm:$0xf]
    %v1585 = vld [vmem:[#allocation14 + $0x60] sm:$0xf]
    %v1586 = vld [vmem:[#allocation14 + $0x64] sm:$0xf]
    %v1587 = vld [vmem:[#allocation14 + $0x68] sm:$0xf]
    %v1588 = vld [vmem:[#allocation14 + $0x6c] sm:$0xf]
    %v1589 = vld [vmem:[#allocation14 + $0x70] sm:$0xf]
    %v1590 = vld [vmem:[#allocation14 + $0x74] sm:$0xf]
    %v1591 = vld [vmem:[#allocation14 + $0x78] sm:$0xf]
    %v1592 = vld [vmem:[#allocation14 + $0x7c] sm:$0xf]
    %v1593 = vld [vmem:[%s14] sm:$0x1]
    %v1595 = vlaneseq
    %v1596 = vshrl.u32 %v1595, 7
    %v1597 = vsub.s32 0, %v1596
    %v1598 = vrot.slane %v1593, %v1597
    %v1632 = vunpack.c.l.b16 %v1561
    %v1633 = vunpack.c.l.b16 %v1562
    %v1634 = vunpack.c.l.b16 %v1563
    %v1635 = vunpack.c.l.b16 %v1564
    %v1636 = vunpack.c.l.b16 %v1565
    %v1637 = vunpack.c.l.b16 %v1566
    %v1638 = vunpack.c.l.b16 %v1567
    %v1639 = vunpack.c.l.b16 %v1568
    %v1640 = vunpack.c.l.b16 %v1569
    %v1641 = vunpack.c.l.b16 %v1570
    %v1642 = vunpack.c.l.b16 %v1571
    %v1643 = vunpack.c.l.b16 %v1572
    %v1644 = vunpack.c.l.b16 %v1573
    %v1645 = vunpack.c.l.b16 %v1574
    %v1646 = vunpack.c.l.b16 %v1575
    %v1647 = vunpack.c.l.b16 %v1576
    %v1648 = vunpack.c.l.b16 %v1577
    %v1649 = vunpack.c.l.b16 %v1578
    %v1650 = vunpack.c.l.b16 %v1579
    %v1651 = vunpack.c.l.b16 %v1580
    %v1652 = vunpack.c.l.b16 %v1581
    %v1653 = vunpack.c.l.b16 %v1582
    %v1654 = vunpack.c.l.b16 %v1583
    %v1655 = vunpack.c.l.b16 %v1584
    %v1656 = vunpack.c.l.b16 %v1585
    %v1657 = vunpack.c.l.b16 %v1586
    %v1658 = vunpack.c.l.b16 %v1587
    %v1659 = vunpack.c.l.b16 %v1588
    %v1660 = vunpack.c.l.b16 %v1589
    %v1661 = vunpack.c.l.b16 %v1590
    %v1662 = vunpack.c.l.b16 %v1591
    %v1663 = vunpack.c.l.b16 %v1592
    %v1664 = vpack.c.b16 %v1633, %v1632
    %v1665 = vpack.c.b16 %v1635, %v1634
    %v1666 = vpack.c.b16 %v1637, %v1636
    %v1667 = vpack.c.b16 %v1639, %v1638
    %v1668 = vpack.c.b16 %v1641, %v1640
    %v1669 = vpack.c.b16 %v1643, %v1642
    %v1670 = vpack.c.b16 %v1645, %v1644
    %v1671 = vpack.c.b16 %v1647, %v1646
    %v1672 = vpack.c.b16 %v1649, %v1648
    %v1673 = vpack.c.b16 %v1651, %v1650
    %v1674 = vpack.c.b16 %v1653, %v1652
    %v1675 = vpack.c.b16 %v1655, %v1654
    %v1676 = vpack.c.b16 %v1657, %v1656
    %v1677 = vpack.c.b16 %v1659, %v1658
    %v1678 = vpack.c.b16 %v1661, %v1660
    %v1679 = vpack.c.b16 %v1663, %v1662
    %1696 = vmatprep.subr.bf16.mxu0 0
    %1697 = vmatpush1.bf16.msra.mxu0 %v1671
    %1698 = vmatprep.subr.bf16.mxu0 0
    %1699 = vmatpush1.bf16.msra.mxu0 %v1670
    %1700 = vmatprep.subr.bf16.mxu0 0
    %1701 = vmatpush1.bf16.msra.mxu0 %v1669
    %1702 = vmatprep.subr.bf16.mxu0 0
    %1703 = vmatpush1.bf16.msra.mxu0 %v1668
    %1704 = vmatprep.subr.bf16.mxu0 0
    %1705 = vmatpush1.bf16.msra.mxu0 %v1667
    %1706 = vmatprep.subr.bf16.mxu0 0
    %1707 = vmatpush1.bf16.msra.mxu0 %v1666
    %1708 = vmatprep.subr.bf16.mxu0 0
    %1709 = vmatpush1.bf16.msra.mxu0 %v1665
    %1710 = vmatprep.subr.bf16.mxu0 0
    %1711 = vmatpush1.bf16.msra.mxu0 %v1664
    %1712 = vmatprep.subr.bf16.mxu0 0
    %1713 = vmatpush2.bf16.msra.mxu0 %v1679
    %1714 = vmatprep.subr.bf16.mxu0 0
    %1715 = vmatpush2.bf16.msra.mxu0 %v1678
    %1716 = vmatprep.subr.bf16.mxu0 0
    %1717 = vmatpush2.bf16.msra.mxu0 %v1677
    %1718 = vmatprep.subr.bf16.mxu0 0
    %1719 = vmatpush2.bf16.msra.mxu0 %v1676
    %1720 = vmatprep.subr.bf16.mxu0 0
    %1721 = vmatpush2.bf16.msra.mxu0 %v1675
    %1722 = vmatprep.subr.bf16.mxu0 0
    %1723 = vmatpush2.bf16.msra.mxu0 %v1674
    %1724 = vmatprep.subr.bf16.mxu0 0
    %1725 = vmatpush2.bf16.msra.mxu0 %v1673
    %1726 = vmatprep.subr.bf16.mxu0 0
    %1727 = vmatpush2.bf16.msra.mxu0 %v1672
    %1728 = vmatprep.mubr.bf16.mxu0 %v1560
    %1729 = vmatmul.mubr.bf16.gmra.mxu0 %v1559
    %v1730 = vpop.f32.mrf.mxu0
    %v1731 = vadd.f32 %v1598, %v1730
    %v1732 = vpop.f32.mrf.mxu0
    %v1733 = vpop.f32.mrf.mxu0
    %v1734 = vadd.f32 %v1598, %v1733
    %v1735 = vpop.f32.mrf.mxu0
    %1736 = vdwg.mxu0
    %1737 = vst [vmem:[#allocation16] sm:$0xff] %v1731
    %1738 = vst [vmem:[#allocation16 + $0x8] sm:$0xff] %v1734
    // Predicated region
    $region94: #{tpu_custom_call.1} parent=1 // pred_check
      _
    $region95: #{tpu_custom_call.1} parent=1 // pred_check_branch
      %1740 = sbr.rel (0) target = $region97
    $region96: #{tpu_custom_call.1} parent=1 // pred_region
      %s1742 = ssub.s32 256, 32
      %1743 = vsyncadd [#allocation4], %s1742
      %s1744 = sshll.u32 [#allocation16], 4
      %s1745 = int_to_ptr.vmem [resolvable:$true] %s1744
      %1750 = dma.vmem_to_hbm [thread:$0]  %s1745, 32, %s15, [#allocation4], 32, 32, 2
    $region97: #{tpu_custom_call.1} parent=1 // pred_fallthru
      _
    // Predicated region
    $region98: #{tpu_custom_call.1} parent=1 // pred_check
      _
    $region99: #{tpu_custom_call.1} parent=1 // pred_check_branch
      %1752 = sbr.rel (0) target = $region101
    $region100: #{tpu_custom_call.1} parent=1 // pred_region
      %1753 = dma.done [#allocation4], 256
    $region101: #{tpu_custom_call.1} parent=1 // pred_fallthru
      _
    %1754 = vsyncpa [#allocation3], 1
    %1755 = vsyncpa [#allocation6], 1
    %1756 = vsyncpa [#allocation9], 1
    %1757 = vsyncpa [#allocation12], 1
    %1758 = vsyncpa [#allocation15], 1
    %1759 = vsyncpa [#allocation4], 1

</llo_original>
